<compile_context>
chip_gen: v7x
topology: tpu7x:2x2x1
jax: 0.10.0
libtpu: 0.0.40
codegen_flags: <defaults>
</compile_context>

<pallas_src>
import functools

import jax
import jax.numpy as jnp
from jax.experimental import pallas as pl
from jax.experimental.pallas import tpu as pltpu


def _round_up(x: int, m: int) -> int:
    return (x + m - 1) // m * m


def _cdiv(a: int, b: int) -> int:
    return (a + b - 1) // b


# ----------------------------------------------------------------------------
# Pallas kernel: fused VAE forward (encoder MLP + reparameterization + decoder)
# One invocation processes a [TB, *] batch tile; weights are resident tiles.
# ----------------------------------------------------------------------------
def _vae_kernel(
    x_ref,        # [TB, Dp]   bf16  flattened (padded) input tile
    eps_ref,      # [TB, Lp]   f32   standard-normal noise tile
    w1_ref,       # [Dp, Hp]   bf16  encoder fc1 weight
    b12_ref,      # [2,  Hp]   f32   rows: [b1 ; b2]
    wmlv_ref,     # [Hp, 2Lp]  bf16  fused [wmu | wlv] head
    bmlv_ref,     # [1,  2Lp]  f32   fused [bmu | blv]
    w2_ref,       # [Lp, Hp]   bf16  decoder fc2 weight
    w3_ref,       # [Hp, Dp]   bf16  decoder fc3 weight
    b3_ref,       # [1,  Dp]   f32
    rx_ref,       # [TB, Dp]   f32   out: reconstruction (pre-reshape, padded)
    mu_ref,       # [TB, Lp]   f32   out: posterior mean (padded)
    lv_ref,       # [TB, Lp]   f32   out: posterior log-variance (padded)
    *,
    lp: int,
):
    # ---- Encoder fc1: bf16 MXU operands, f32 accumulation -------------------
    h = jnp.dot(x_ref[...], w1_ref[...], preferred_element_type=jnp.float32)
    h = jnp.maximum(h + b12_ref[0:1, :], 0.0)          # bias + ReLU (f32, VPU)
    h_b = h.astype(jnp.bfloat16)

    # ---- Fused mu|logvar head: single MXU pass with N = 2*Lp ----------------
    mulv = jnp.dot(h_b, wmlv_ref[...], preferred_element_type=jnp.float32)
    mulv = mulv + bmlv_ref[...]
    mu = mulv[:, :lp]                                   # lane-aligned split
    logvar = mulv[:, lp:]

    # ---- Reparameterization: z = eps * exp(0.5*logvar) + mu (EUP/VPU) -------
    std = jnp.exp(0.5 * logvar)
    z = eps_ref[...] * std + mu

    # ---- Decoder -------------------------------------------------------------
    h2 = jnp.dot(z.astype(jnp.bfloat16), w2_ref[...],
                 preferred_element_type=jnp.float32)
    h2 = jnp.maximum(h2 + b12_ref[1:2, :], 0.0)

    logits = jnp.dot(h2.astype(jnp.bfloat16), w3_ref[...],
                     preferred_element_type=jnp.float32) + b3_ref[...]

    # Sigmoid as exp + approx reciprocal: both land on the EUP slot.
    rx_ref[...] = pl.reciprocal(1.0 + jnp.exp(-logits), approx=True)
    mu_ref[...] = mu
    lv_ref[...] = logvar


# ----------------------------------------------------------------------------
# Parameter init (f32 master copy)
# ----------------------------------------------------------------------------
def init_vae_params(key, in_features: int, hidden_dim: int, latent_dim: int):
    ks = jax.random.split(key, 5)

    def lin(k, fan_in, fan_out):
        scale = 1.0 / jnp.sqrt(jnp.float32(fan_in))
        w = jax.random.uniform(k, (fan_in, fan_out), jnp.float32, -scale, scale)
        b = jnp.zeros((1, fan_out), jnp.float32)
        return w, b

    w1, b1 = lin(ks[0], in_features, hidden_dim)
    wmu, bmu = lin(ks[1], hidden_dim, latent_dim)
    wlv, blv = lin(ks[2], hidden_dim, latent_dim)
    w2, b2 = lin(ks[3], latent_dim, hidden_dim)
    w3, b3 = lin(ks[4], hidden_dim, in_features)
    return dict(w1=w1, b1=b1, wmu=wmu, bmu=bmu, wlv=wlv, blv=blv,
                w2=w2, b2=b2, w3=w3, b3=b3)


# ----------------------------------------------------------------------------
# One-time weight preparation (hoisted out of the per-call forward):
# zero-pad to lane multiples, cast MXU operands to bf16, fuse mu|logvar head
# and the [b1;b2] biases. Call once; reuse the returned dict for every forward.
# ----------------------------------------------------------------------------
def prepare_vae_params(params):
    D, Hd = params["w1"].shape
    L = params["wmu"].shape[1]
    Dp, Hp, Lp = _round_up(D, 128), _round_up(Hd, 128), _round_up(L, 128)

    def pad_w(w, r, c):              # zero-pad (exact) + bf16 MXU operand
        return jnp.pad(w, ((0, r - w.shape[0]),
                           (0, c - w.shape[1]))).astype(jnp.bfloat16)

    def pad_b(b, c):                 # zero-pad, keep f32 (added post-accum)
        return jnp.pad(b, ((0, 0), (0, c - b.shape[1]))).astype(jnp.float32)

    w1 = pad_w(params["w1"], Dp, Hp)
    w2 = pad_w(params["w2"], Lp, Hp)
    w3 = pad_w(params["w3"], Hp, Dp)
    wmlv = jnp.concatenate([pad_w(params["wmu"], Hp, Lp),
                            pad_w(params["wlv"], Hp, Lp)], axis=1)   # (Hp, 2Lp)
    b12 = jnp.concatenate([pad_b(params["b1"], Hp),
                           pad_b(params["b2"], Hp)], axis=0)         # (2, Hp)
    bmlv = jnp.concatenate([pad_b(params["bmu"], Lp),
                            pad_b(params["blv"], Lp)], axis=1)       # (1, 2Lp)
    b3 = pad_b(params["b3"], Dp)                                     # (1, Dp)
    return dict(w1=w1, b12=b12, wmlv=wmlv, bmlv=bmlv, w2=w2, w3=w3, b3=b3)


# ----------------------------------------------------------------------------
# Wrapper: batch padding + pallas_call with a parallel batch grid
# ----------------------------------------------------------------------------
@jax.jit
def vae_forward(x_nchw, eps, prepared):
    """VAE forward. x_nchw: [B, C, H, W]; eps: [B, latent_dim] f32;
    prepared: output of prepare_vae_params (padded bf16 weights)."""
    B, C, H, W = x_nchw.shape
    D = C * H * W
    L = eps.shape[1]

    Dp, Hp = prepared["w1"].shape
    Lp = prepared["wmlv"].shape[1] // 2

    # ---- batch tiling: sublane-pad; prefer >=2 grid steps (v7x 2 TCs), ------
    # ---- and up to 256 rows per tile to fill the v6e/v7x MXU row dim. -------
    B8 = _round_up(B, 8)
    TB = min(B8, 256)
    if B8 // TB < 2 and B8 >= 16:
        TB = _round_up(_cdiv(B8, 2), 8)
    nb = _cdiv(B8, TB)
    Bp = nb * TB
    # NOTE: for B8 == 8 the grid collapses to a single step (cannot go below
    # 8 sublanes); on v7x one TensorCore idles for such tiny batches.

    # glue: NCHW -> [B, D], bf16 (matches MXU operand cast), zero-pad (exact)
    x_p = jnp.pad(x_nchw.reshape(B, D).astype(jnp.bfloat16),
                  ((0, Bp - B), (0, Dp - D)))
    eps_p = jnp.pad(eps.astype(jnp.float32), ((0, Bp - B), (0, Lp - L)))

    # weights/biases: constant index_map + single buffer -> VMEM-resident once
    def wspec(shape):
        return pl.BlockSpec(shape, lambda i: (0, 0),
                            pipeline_mode=pl.Buffered(1))

    in_specs = [
        pl.BlockSpec((TB, Dp), lambda i: (i, 0)),   # x tile (bf16)
        pl.BlockSpec((TB, Lp), lambda i: (i, 0)),   # eps tile (f32)
        wspec((Dp, Hp)),                            # w1
        wspec((2, Hp)),                             # [b1 ; b2]
        wspec((Hp, 2 * Lp)),                        # [wmu | wlv]
        wspec((1, 2 * Lp)),                         # [bmu | blv]
        wspec((Lp, Hp)),                            # w2
        wspec((Hp, Dp)),                            # w3
        wspec((1, Dp)),                             # b3
    ]
    out_specs = (
        pl.BlockSpec((TB, Dp), lambda i: (i, 0)),   # rx  (lane-dense)
        pl.BlockSpec((TB, Lp), lambda i: (i, 0)),   # mu
        pl.BlockSpec((TB, Lp), lambda i: (i, 0)),   # logvar
    )

    # ---- VMEM budget: weights counted once (single-buffered); only the ------
    # ---- pipelined activation streams are double-buffered. ------------------
    w_bytes = 2 * (Dp * Hp + Hp * 2 * Lp + Lp * Hp + Hp * Dp)       # bf16 weights
    bias_bytes = 4 * (8 * Hp + 8 * 2 * Lp + 8 * Dp)                 # f32, sublane-padded
    stream_bytes = 2 * (2 * TB * Dp          # x (bf16)
                        + 4 * TB * Lp        # eps
                        + 4 * TB * Dp        # rx
                        + 2 * 4 * TB * Lp)   # mu, logvar
    temp_bytes = 4 * TB * (2 * Hp + 2 * Lp + Lp + Dp)               # h/h2, mulv, z, logits
    vmem_bytes = int(min(w_bytes + bias_bytes + stream_bytes + temp_bytes
                         + (4 << 20), 48 << 20))

    # ---- cost estimate (matmul flops, exp/recip transcendentals, HBM bytes) -
    flops = 2 * Bp * (Dp * Hp + Hp * 2 * Lp + Lp * Hp + Hp * Dp)
    transcendentals = Bp * (Lp + 2 * Dp)
    bytes_accessed = (2 * Bp * Dp + 4 * Bp * Lp                     # x, eps
                      + w_bytes + 4 * (2 * Hp + 2 * Lp + Dp)        # weights, biases
                      + 4 * Bp * Dp + 2 * 4 * Bp * Lp)              # rx, mu, logvar

    kernel = functools.partial(_vae_kernel, lp=Lp)

    rx_p, mu_p, lv_p = pl.pallas_call(
        kernel,
        grid=(nb,),
        in_specs=in_specs,
        out_specs=out_specs,
        out_shape=(
            jax.ShapeDtypeStruct((Bp, Dp), jnp.float32),
            jax.ShapeDtypeStruct((Bp, Lp), jnp.float32),
            jax.ShapeDtypeStruct((Bp, Lp), jnp.float32),
        ),
        compiler_params=pltpu.CompilerParams(
            dimension_semantics=("parallel",),
            vmem_limit_bytes=vmem_bytes,
        ),
        cost_estimate=pl.CostEstimate(
            flops=int(flops),
            transcendentals=int(transcendentals),
            bytes_accessed=int(bytes_accessed),
        ),
    )(x_p, eps_p,
      prepared["w1"], prepared["b12"], prepared["wmlv"], prepared["bmlv"],
      prepared["w2"], prepared["w3"], prepared["b3"])

    # glue: strip padding, back to NCHW
    rx = rx_p[:B, :D].reshape(B, C, H, W)
    return rx, mu_p[:B, :L], lv_p[:B, :L]


# ----------------------------------------------------------------------------
# Pure-JAX reference (mirrors the kernel's bf16-operand / f32-accumulate math)
# ----------------------------------------------------------------------------
def vae_forward_ref(x_nchw, eps, params):
    B = x_nchw.shape[0]
    x = x_nchw.reshape(B, -1)

    def mm(a, w):
        return jnp.dot(a.astype(jnp.bfloat16), w.astype(jnp.bfloat16),
                       preferred_element_type=jnp.float32)

    h = jnp.maximum(mm(x, params["w1"]) + params["b1"], 0.0)
    mu = mm(h, params["wmu"]) + params["bmu"]
    logvar = mm(h, params["wlv"]) + params["blv"]
    z = eps * jnp.exp(0.5 * logvar) + mu
    h2 = jnp.maximum(mm(z, params["w2"]) + params["b2"], 0.0)
    rx = jax.nn.sigmoid(mm(h2, params["w3"]) + params["b3"])
    return rx.reshape(x_nchw.shape), mu, logvar


if __name__ == "__main__":
    # Small shapes consistent with the module's forward.
    B, C, H, W = 2, 4, 16, 16          # NCHW input
    latent_dim = 16
    hidden_dim = 32
    in_features = C * H * W            # 1024

    key = jax.random.PRNGKey(0)
    k_x, k_eps, k_params = jax.random.split(key, 3)

    x = jax.random.uniform(k_x, (B, C, H, W), jnp.float32)        # image-like in [0,1)
    eps = jax.random.normal(k_eps, (B, latent_dim), jnp.float32)  # randn_like(std)
    params = init_vae_params(k_params, in_features, hidden_dim, latent_dim)

    # One-time weight prep (padded, bf16, heads fused) — reused across calls.
    prepared = prepare_vae_params(params)
    jax.block_until_ready(prepared)

    rx, mu, logvar = vae_forward(x, eps, prepared)
    jax.block_until_ready((rx, mu, logvar))

    # correctness check against pure-JAX reference (same bf16 matmul recipe)
    rx_r, mu_r, lv_r = vae_forward_ref(x, eps, params)
    assert rx.shape == (B, C, H, W)
    assert mu.shape == (B, latent_dim) and logvar.shape == (B, latent_dim)
    assert jnp.allclose(mu, mu_r, atol=1e-3), "mu mismatch"
    assert jnp.allclose(logvar, lv_r, atol=1e-3), "logvar mismatch"
    # rx tolerance slightly looser: kernel uses EUP approx-reciprocal sigmoid
    assert jnp.allclose(rx, rx_r, atol=2e-3), "reconstruction mismatch"

    print("KERNEL_OK")
</pallas_src>

<mosaic_0001>
module attributes {stable_mosaic.version = 11 : i64} {
  func.func @_vae_kernel(%arg0: i32, %arg1: memref<8x1024xbf16, #tpu.memory_space<vmem>>, %arg2: memref<8x128xf32, #tpu.memory_space<vmem>>, %arg3: memref<1024x128xbf16, #tpu.memory_space<vmem>>, %arg4: memref<2x128xf32, #tpu.memory_space<vmem>>, %arg5: memref<128x256xbf16, #tpu.memory_space<vmem>>, %arg6: memref<1x256xf32, #tpu.memory_space<vmem>>, %arg7: memref<128x128xbf16, #tpu.memory_space<vmem>>, %arg8: memref<128x1024xbf16, #tpu.memory_space<vmem>>, %arg9: memref<1x1024xf32, #tpu.memory_space<vmem>>, %arg10: memref<8x1024xf32, #tpu.memory_space<vmem>>, %arg11: memref<8x128xf32, #tpu.memory_space<vmem>>, %arg12: memref<8x128xf32, #tpu.memory_space<vmem>>) attributes {dimension_semantics = [#tpu.dimension_semantics<parallel>], iteration_bounds = array<i64: 1>, scalar_prefetch = 0 : i64, scratch_operands = 0 : i64, tpu.core_type = #tpu.core_type<tc>, window_params = [{transform_indices = @transform_0, window_bounds = array<i64: 8, 1024>}, {transform_indices = @transform_1, window_bounds = array<i64: 8, 128>}, {pipeline_mode = #tpu.pipeline_mode<synchronous>, transform_indices = @transform_2, window_bounds = array<i64: 1024, 128>}, {pipeline_mode = #tpu.pipeline_mode<synchronous>, transform_indices = @transform_3, window_bounds = array<i64: 2, 128>}, {pipeline_mode = #tpu.pipeline_mode<synchronous>, transform_indices = @transform_4, window_bounds = array<i64: 128, 256>}, {pipeline_mode = #tpu.pipeline_mode<synchronous>, transform_indices = @transform_5, window_bounds = array<i64: 1, 256>}, {pipeline_mode = #tpu.pipeline_mode<synchronous>, transform_indices = @transform_6, window_bounds = array<i64: 128, 128>}, {pipeline_mode = #tpu.pipeline_mode<synchronous>, transform_indices = @transform_7, window_bounds = array<i64: 128, 1024>}, {pipeline_mode = #tpu.pipeline_mode<synchronous>, transform_indices = @transform_8, window_bounds = array<i64: 1, 1024>}, {transform_indices = @transform_9, window_bounds = array<i64: 8, 1024>}, {transform_indices = @transform_10, window_bounds = array<i64: 8, 128>}, {transform_indices = @transform_11, window_bounds = array<i64: 8, 128>}]} {
    %c0 = arith.constant 0 : index
    %c0_0 = arith.constant 0 : index
    %0 = vector.load %arg1[%c0, %c0_0] : memref<8x1024xbf16, #tpu.memory_space<vmem>>, vector<8x1024xbf16>
    %c0_1 = arith.constant 0 : index
    %c0_2 = arith.constant 0 : index
    %1 = vector.load %arg3[%c0_1, %c0_2] : memref<1024x128xbf16, #tpu.memory_space<vmem>>, vector<1024x128xbf16>
    %cst = arith.constant dense<0.000000e+00> : vector<8x128xf32>
    %2 = tpu.matmul %0, %1, %cst {dimension_numbers = #tpu.dot_dimension_numbers<[1], [0], [0], [1], [0, 0, 1, 1], [], []>} : vector<8x1024xbf16>, vector<1024x128xbf16>, vector<8x128xf32> -> vector<8x128xf32>
    %c0_3 = arith.constant 0 : index
    %c0_4 = arith.constant 0 : index
    %3 = vector.load %arg4[%c0_3, %c0_4] : memref<2x128xf32, #tpu.memory_space<vmem>>, vector<1x128xf32>
    %4 = vector.broadcast %3 : vector<1x128xf32> to vector<8x128xf32>
    %5 = arith.addf %2, %4 : vector<8x128xf32>
    %cst_5 = arith.constant 0.000000e+00 : f32
    %6 = vector.broadcast %cst_5 : f32 to vector<8x128xf32>
    %7 = arith.maximumf %5, %6 : vector<8x128xf32>
    %8 = arith.truncf %7 : vector<8x128xf32> to vector<8x128xbf16>
    %c0_6 = arith.constant 0 : index
    %c0_7 = arith.constant 0 : index
    %9 = vector.load %arg5[%c0_6, %c0_7] : memref<128x256xbf16, #tpu.memory_space<vmem>>, vector<128x256xbf16>
    %cst_8 = arith.constant dense<0.000000e+00> : vector<8x256xf32>
    %10 = tpu.matmul %8, %9, %cst_8 {dimension_numbers = #tpu.dot_dimension_numbers<[1], [0], [0], [1], [0, 0, 1, 1], [], []>} : vector<8x128xbf16>, vector<128x256xbf16>, vector<8x256xf32> -> vector<8x256xf32>
    %c0_9 = arith.constant 0 : index
    %c0_10 = arith.constant 0 : index
    %11 = vector.load %arg6[%c0_9, %c0_10] : memref<1x256xf32, #tpu.memory_space<vmem>>, vector<1x256xf32>
    %12 = vector.broadcast %11 : vector<1x256xf32> to vector<8x256xf32>
    %13 = arith.addf %10, %12 : vector<8x256xf32>
    %14 = vector.extract_strided_slice %13 {offsets = [0, 0], sizes = [8, 128], strides = [1, 1]} : vector<8x256xf32> to vector<8x128xf32>
    %15 = vector.extract_strided_slice %13 {offsets = [0, 128], sizes = [8, 128], strides = [1, 1]} : vector<8x256xf32> to vector<8x128xf32>
    %cst_11 = arith.constant 5.000000e-01 : f32
    %16 = vector.broadcast %cst_11 : f32 to vector<8x128xf32>
    %17 = arith.mulf %16, %15 : vector<8x128xf32>
    %18 = math.exp %17 : vector<8x128xf32>
    %c0_12 = arith.constant 0 : index
    %c0_13 = arith.constant 0 : index
    %19 = vector.load %arg2[%c0_12, %c0_13] : memref<8x128xf32, #tpu.memory_space<vmem>>, vector<8x128xf32>
    %20 = arith.mulf %19, %18 : vector<8x128xf32>
    %21 = arith.addf %20, %14 : vector<8x128xf32>
    %22 = arith.truncf %21 : vector<8x128xf32> to vector<8x128xbf16>
    %c0_14 = arith.constant 0 : index
    %c0_15 = arith.constant 0 : index
    %23 = vector.load %arg7[%c0_14, %c0_15] : memref<128x128xbf16, #tpu.memory_space<vmem>>, vector<128x128xbf16>
    %cst_16 = arith.constant dense<0.000000e+00> : vector<8x128xf32>
    %24 = tpu.matmul %22, %23, %cst_16 {dimension_numbers = #tpu.dot_dimension_numbers<[1], [0], [0], [1], [0, 0, 1, 1], [], []>} : vector<8x128xbf16>, vector<128x128xbf16>, vector<8x128xf32> -> vector<8x128xf32>
    %c1 = arith.constant 1 : index
    %c0_17 = arith.constant 0 : index
    %25 = vector.load %arg4[%c1, %c0_17] : memref<2x128xf32, #tpu.memory_space<vmem>>, vector<1x128xf32>
    %26 = vector.broadcast %25 : vector<1x128xf32> to vector<8x128xf32>
    %27 = arith.addf %24, %26 : vector<8x128xf32>
    %cst_18 = arith.constant 0.000000e+00 : f32
    %28 = vector.broadcast %cst_18 : f32 to vector<8x128xf32>
    %29 = arith.maximumf %27, %28 : vector<8x128xf32>
    %30 = arith.truncf %29 : vector<8x128xf32> to vector<8x128xbf16>
    %c0_19 = arith.constant 0 : index
    %c0_20 = arith.constant 0 : index
    %31 = vector.load %arg8[%c0_19, %c0_20] : memref<128x1024xbf16, #tpu.memory_space<vmem>>, vector<128x1024xbf16>
    %cst_21 = arith.constant dense<0.000000e+00> : vector<8x1024xf32>
    %32 = tpu.matmul %30, %31, %cst_21 {dimension_numbers = #tpu.dot_dimension_numbers<[1], [0], [0], [1], [0, 0, 1, 1], [], []>} : vector<8x128xbf16>, vector<128x1024xbf16>, vector<8x1024xf32> -> vector<8x1024xf32>
    %c0_22 = arith.constant 0 : index
    %c0_23 = arith.constant 0 : index
    %33 = vector.load %arg9[%c0_22, %c0_23] : memref<1x1024xf32, #tpu.memory_space<vmem>>, vector<1x1024xf32>
    %34 = vector.broadcast %33 : vector<1x1024xf32> to vector<8x1024xf32>
    %35 = arith.addf %32, %34 : vector<8x1024xf32>
    %cst_24 = arith.constant 0.000000e+00 : f32
    %36 = vector.broadcast %cst_24 : f32 to vector<8x1024xf32>
    %37 = arith.subf %36, %35 : vector<8x1024xf32>
    %38 = math.exp %37 : vector<8x1024xf32>
    %cst_25 = arith.constant 1.000000e+00 : f32
    %39 = vector.broadcast %cst_25 : f32 to vector<8x1024xf32>
    %40 = arith.addf %39, %38 : vector<8x1024xf32>
    %41 = tpu.reciprocal %40 {approx = true} : vector<8x1024xf32> -> vector<8x1024xf32>
    %c0_26 = arith.constant 0 : index
    %c0_27 = arith.constant 0 : index
    %42 = vector.load %arg10[%c0_26, %c0_27] : memref<8x1024xf32, #tpu.memory_space<vmem>>, vector<8x1024xf32>
    tpu.vector_store %arg10[%c0_26, %c0_27], %41 {strides = array<i32>} : memref<8x1024xf32, #tpu.memory_space<vmem>>, vector<8x1024xf32>,
    %c0_28 = arith.constant 0 : index
    %c0_29 = arith.constant 0 : index
    %43 = vector.load %arg11[%c0_28, %c0_29] : memref<8x128xf32, #tpu.memory_space<vmem>>, vector<8x128xf32>
    tpu.vector_store %arg11[%c0_28, %c0_29], %14 {strides = array<i32>} : memref<8x128xf32, #tpu.memory_space<vmem>>, vector<8x128xf32>,
    %c0_30 = arith.constant 0 : index
    %c0_31 = arith.constant 0 : index
    %44 = vector.load %arg12[%c0_30, %c0_31] : memref<8x128xf32, #tpu.memory_space<vmem>>, vector<8x128xf32>
    tpu.vector_store %arg12[%c0_30, %c0_31], %15 {strides = array<i32>} : memref<8x128xf32, #tpu.memory_space<vmem>>, vector<8x128xf32>,
    return
  }
  func.func @transform_0(%arg0: i32) -> (i32, i32) {
    %c0_i32 = arith.constant 0 : i32
    %c0_i32_0 = arith.constant 0 : i32
    return %arg0, %c0_i32 : i32, i32
  }
  func.func @transform_1(%arg0: i32) -> (i32, i32) {
    %c0_i32 = arith.constant 0 : i32
    %c0_i32_0 = arith.constant 0 : i32
    return %arg0, %c0_i32 : i32, i32
  }
  func.func @transform_2(%arg0: i32) -> (i32, i32) {
    %c0_i32 = arith.constant 0 : i32
    %c0_i32_0 = arith.constant 0 : i32
    %c0_i32_1 = arith.constant 0 : i32
    return %c0_i32, %c0_i32_0 : i32, i32
  }
  func.func @transform_3(%arg0: i32) -> (i32, i32) {
    %c0_i32 = arith.constant 0 : i32
    %c0_i32_0 = arith.constant 0 : i32
    %c0_i32_1 = arith.constant 0 : i32
    return %c0_i32, %c0_i32_0 : i32, i32
  }
  func.func @transform_4(%arg0: i32) -> (i32, i32) {
    %c0_i32 = arith.constant 0 : i32
    %c0_i32_0 = arith.constant 0 : i32
    %c0_i32_1 = arith.constant 0 : i32
    return %c0_i32, %c0_i32_0 : i32, i32
  }
  func.func @transform_5(%arg0: i32) -> (i32, i32) {
    %c0_i32 = arith.constant 0 : i32
    %c0_i32_0 = arith.constant 0 : i32
    %c0_i32_1 = arith.constant 0 : i32
    return %c0_i32, %c0_i32_0 : i32, i32
  }
  func.func @transform_6(%arg0: i32) -> (i32, i32) {
    %c0_i32 = arith.constant 0 : i32
    %c0_i32_0 = arith.constant 0 : i32
    %c0_i32_1 = arith.constant 0 : i32
    return %c0_i32, %c0_i32_0 : i32, i32
  }
  func.func @transform_7(%arg0: i32) -> (i32, i32) {
    %c0_i32 = arith.constant 0 : i32
    %c0_i32_0 = arith.constant 0 : i32
    %c0_i32_1 = arith.constant 0 : i32
    return %c0_i32, %c0_i32_0 : i32, i32
  }
  func.func @transform_8(%arg0: i32) -> (i32, i32) {
    %c0_i32 = arith.constant 0 : i32
    %c0_i32_0 = arith.constant 0 : i32
    %c0_i32_1 = arith.constant 0 : i32
    return %c0_i32, %c0_i32_0 : i32, i32
  }
  func.func @transform_9(%arg0: i32) -> (i32, i32) {
    %c0_i32 = arith.constant 0 : i32
    %c0_i32_0 = arith.constant 0 : i32
    return %arg0, %c0_i32 : i32, i32
  }
  func.func @transform_10(%arg0: i32) -> (i32, i32) {
    %c0_i32 = arith.constant 0 : i32
    %c0_i32_0 = arith.constant 0 : i32
    return %arg0, %c0_i32 : i32, i32
  }
  func.func @transform_11(%arg0: i32) -> (i32, i32) {
    %c0_i32 = arith.constant 0 : i32
    %c0_i32_0 = arith.constant 0 : i32
    return %arg0, %c0_i32 : i32, i32
  }
}

</mosaic_0001>

<llo_original>
// kernel: vae_forward.1
$region0: #{vae_forward.1}
  #allocation0 [shape = 'u32[]', space=smem, size = 0x4, offset = 0x4, fixed_abs, tag = 'smem constant byte address 0x4 - core index']
  #allocation1 [shape = 'u32[144,128]{1,0:T(1,128)}', space=vmem, size = 0x12000, scoped, tag = 'internal scratch']
  %s0 = inlined_call_operand.vmem [shape: bf16[8,1024], index: 0, kind: input, shape index: {}]
  %s1 = inlined_call_operand.vmem [shape: f32[8,128], index: 1, kind: input, shape index: {}]
  %s2 = inlined_call_operand.hbm [shape: bf16[1024,128], index: 2, kind: input, shape index: {}]
  %s3 = inlined_call_operand.vmem [shape: f32[2,128], index: 3, kind: input, shape index: {}]
  %s4 = inlined_call_operand.vmem [shape: bf16[128,256], index: 4, kind: input, shape index: {}]
  %s5 = inlined_call_operand.vmem [shape: f32[1,256], index: 5, kind: input, shape index: {}]
  %s6 = inlined_call_operand.vmem [shape: bf16[128,128], index: 6, kind: input, shape index: {}]
  %s7 = inlined_call_operand.hbm [shape: bf16[128,1024], index: 7, kind: input, shape index: {}]
  %s8 = inlined_call_operand.vmem [shape: f32[1,1024], index: 8, kind: input, shape index: {}]
  %s9 = inlined_call_operand.vmem [shape: f32[8,1024], index: 9, kind: output, shape index: {0}]
  %s10 = inlined_call_operand.vmem [shape: f32[8,128], index: 10, kind: output, shape index: {1}]
  %s11 = inlined_call_operand.vmem [shape: f32[8,128], index: 11, kind: output, shape index: {2}]
  %12 = xla_tuple %s9, %s10, %s11
  %s13 = sld [smem:[#allocation0]]
  $region70: #{vae_forward.1} parent=0
    _
  %s15 = ssub.s32 1, %s13
  %s16 = scalar_select 0, %s15, %s13
  $region1: #{vae_forward.1} parent=0
    #allocation2 [shape = 'u8[262144]{0}', space=vmem, size = 0x40000, scoped, tag = 'input window, operand 2, single buffered']
    #allocation3 [shape = 's32[1]{0}', space=sflag, size = 0x4, scoped, tag = 'scoped memory for vae_forward.1']
    #allocation4 [shape = 'u8[262144]{0}', space=vmem, size = 0x40000, scoped, tag = 'input window, operand 7, single buffered']
    #allocation5 [shape = 's32[1]{0}', space=sflag, size = 0x4, scoped, tag = 'scoped memory for vae_forward.1']
    %17 = vsyncpa [#allocation3], 0
    %18 = vsyncpa [#allocation5], 0
    // Predicated region
    $region2: #{vae_forward.1} parent=1 // pred_check
      _
    $region3: #{vae_forward.1} parent=1 // pred_check_branch
      %20 = sbr.rel (0) target = $region5
    $region4: #{vae_forward.1} parent=1 // pred_region
      _
    $region5: #{vae_forward.1} parent=1 // pred_fallthru
      _
    // Predicated region
    $region6: #{vae_forward.1} parent=1 // pred_check
      _
    $region7: #{vae_forward.1} parent=1 // pred_check_branch
      %22 = sbr.rel (0) target = $region9
    $region8: #{vae_forward.1} parent=1 // pred_region
      _
    $region9: #{vae_forward.1} parent=1 // pred_fallthru
      _
    // Predicated region
    $region10: #{vae_forward.1} parent=1 // pred_check
      _
    $region11: #{vae_forward.1} parent=1 // pred_check_branch
      %24 = sbr.rel (0) target = $region13
    $region12: #{vae_forward.1} parent=1 // pred_region
      %s26 = ssub.s32 8192, 8192
      %27 = vsyncadd [#allocation3], %s26
      %s28 = sshll.u32 [#allocation2], 4
      %s29 = int_to_ptr.vmem [resolvable:$true] %s28
      %34 = dma.hbm_to_vmem [thread:$0]  %s2, 8192, %s29, [#allocation3], 64, 64, 4
    $region13: #{vae_forward.1} parent=1 // pred_fallthru
      _
    // Predicated region
    $region14: #{vae_forward.1} parent=1 // pred_check
      _
    $region15: #{vae_forward.1} parent=1 // pred_check_branch
      %36 = sbr.rel (0) target = $region17
    $region16: #{vae_forward.1} parent=1 // pred_region
      _
    $region17: #{vae_forward.1} parent=1 // pred_fallthru
      _
    // Predicated region
    $region18: #{vae_forward.1} parent=1 // pred_check
      _
    $region19: #{vae_forward.1} parent=1 // pred_check_branch
      %38 = sbr.rel (0) target = $region21
    $region20: #{vae_forward.1} parent=1 // pred_region
      _
    $region21: #{vae_forward.1} parent=1 // pred_fallthru
      _
    // Predicated region
    $region22: #{vae_forward.1} parent=1 // pred_check
      _
    $region23: #{vae_forward.1} parent=1 // pred_check_branch
      %40 = sbr.rel (0) target = $region25
    $region24: #{vae_forward.1} parent=1 // pred_region
      _
    $region25: #{vae_forward.1} parent=1 // pred_fallthru
      _
    // Predicated region
    $region26: #{vae_forward.1} parent=1 // pred_check
      _
    $region27: #{vae_forward.1} parent=1 // pred_check_branch
      %42 = sbr.rel (0) target = $region29
    $region28: #{vae_forward.1} parent=1 // pred_region
      _
    $region29: #{vae_forward.1} parent=1 // pred_fallthru
      _
    // Predicated region
    $region30: #{vae_forward.1} parent=1 // pred_check
      _
    $region31: #{vae_forward.1} parent=1 // pred_check_branch
      %44 = sbr.rel (0) target = $region33
    $region32: #{vae_forward.1} parent=1 // pred_region
      %s46 = ssub.s32 8192, 8192
      %47 = vsyncadd [#allocation5], %s46
      %s48 = sshll.u32 [#allocation4], 4
      %s49 = int_to_ptr.vmem [resolvable:$true] %s48
      %54 = dma.hbm_to_vmem [thread:$0]  %s7, 8192, %s49, [#allocation5], 512, 512, 32
    $region33: #{vae_forward.1} parent=1 // pred_fallthru
      _
    // Predicated region
    $region34: #{vae_forward.1} parent=1 // pred_check
      _
    $region35: #{vae_forward.1} parent=1 // pred_check_branch
      %56 = sbr.rel (0) target = $region37
    $region36: #{vae_forward.1} parent=1 // pred_region
      _
    $region37: #{vae_forward.1} parent=1 // pred_fallthru
      _
    // Predicated region
    $region38: #{vae_forward.1} parent=1 // pred_check
      _
    $region39: #{vae_forward.1} parent=1 // pred_check_branch
      %58 = sbr.rel (0) target = $region41
    $region40: #{vae_forward.1} parent=1 // pred_region
      %59 = dma.done [#allocation3], 8192
    $region41: #{vae_forward.1} parent=1 // pred_fallthru
      _
    // Predicated region
    $region42: #{vae_forward.1} parent=1 // pred_check
      _
    $region43: #{vae_forward.1} parent=1 // pred_check_branch
      %61 = sbr.rel (0) target = $region45
    $region44: #{vae_forward.1} parent=1 // pred_region
      %62 = dma.done [#allocation5], 8192
    $region45: #{vae_forward.1} parent=1 // pred_fallthru
      _
    %v64 = vld [vmem:[%s0] sm:$0xff]
    %v65 = vld [vmem:[%s0 + $0x8] sm:$0xff]
    %v66 = vld [vmem:[%s0 + $0x10] sm:$0xff]
    %v67 = vld [vmem:[%s0 + $0x18] sm:$0xff]
    %v68 = vld [vmem:[#allocation2] sm:$0xf]
    %v69 = vld [vmem:[#allocation2 + $0x4] sm:$0xf]
    %v70 = vld [vmem:[#allocation2 + $0x8] sm:$0xf]
    %v71 = vld [vmem:[#allocation2 + $0xc] sm:$0xf]
    %v72 = vld [vmem:[#allocation2 + $0x10] sm:$0xf]
    %v73 = vld [vmem:[#allocation2 + $0x14] sm:$0xf]
    %v74 = vld [vmem:[#allocation2 + $0x18] sm:$0xf]
    %v75 = vld [vmem:[#allocation2 + $0x1c] sm:$0xf]
    %v76 = vld [vmem:[#allocation2 + $0x20] sm:$0xf]
    %v77 = vld [vmem:[#allocation2 + $0x24] sm:$0xf]
    %v78 = vld [vmem:[#allocation2 + $0x28] sm:$0xf]
    %v79 = vld [vmem:[#allocation2 + $0x2c] sm:$0xf]
    %v80 = vld [vmem:[#allocation2 + $0x30] sm:$0xf]
    %v81 = vld [vmem:[#allocation2 + $0x34] sm:$0xf]
    %v82 = vld [vmem:[#allocation2 + $0x38] sm:$0xf]
    %v83 = vld [vmem:[#allocation2 + $0x3c] sm:$0xf]
    %v84 = vld [vmem:[#allocation2 + $0x40] sm:$0xf]
    %v85 = vld [vmem:[#allocation2 + $0x44] sm:$0xf]
    %v86 = vld [vmem:[#allocation2 + $0x48] sm:$0xf]
    %v87 = vld [vmem:[#allocation2 + $0x4c] sm:$0xf]
    %v88 = vld [vmem:[#allocation2 + $0x50] sm:$0xf]
    %v89 = vld [vmem:[#allocation2 + $0x54] sm:$0xf]
    %v90 = vld [vmem:[#allocation2 + $0x58] sm:$0xf]
    %v91 = vld [vmem:[#allocation2 + $0x5c] sm:$0xf]
    %v92 = vld [vmem:[#allocation2 + $0x60] sm:$0xf]
    %v93 = vld [vmem:[#allocation2 + $0x64] sm:$0xf]
    %v94 = vld [vmem:[#allocation2 + $0x68] sm:$0xf]
    %v95 = vld [vmem:[#allocation2 + $0x6c] sm:$0xf]
    %v96 = vld [vmem:[#allocation2 + $0x70] sm:$0xf]
    %v97 = vld [vmem:[#allocation2 + $0x74] sm:$0xf]
    %v98 = vld [vmem:[#allocation2 + $0x78] sm:$0xf]
    %v99 = vld [vmem:[#allocation2 + $0x7c] sm:$0xf]
    %v100 = vld [vmem:[#allocation2 + $0x80] sm:$0xf]
    %v101 = vld [vmem:[#allocation2 + $0x84] sm:$0xf]
    %v102 = vld [vmem:[#allocation2 + $0x88] sm:$0xf]
    %v103 = vld [vmem:[#allocation2 + $0x8c] sm:$0xf]
    %v104 = vld [vmem:[#allocation2 + $0x90] sm:$0xf]
    %v105 = vld [vmem:[#allocation2 + $0x94] sm:$0xf]
    %v106 = vld [vmem:[#allocation2 + $0x98] sm:$0xf]
    %v107 = vld [vmem:[#allocation2 + $0x9c] sm:$0xf]
    %v108 = vld [vmem:[#allocation2 + $0xa0] sm:$0xf]
    %v109 = vld [vmem:[#allocation2 + $0xa4] sm:$0xf]
    %v110 = vld [vmem:[#allocation2 + $0xa8] sm:$0xf]
    %v111 = vld [vmem:[#allocation2 + $0xac] sm:$0xf]
    %v112 = vld [vmem:[#allocation2 + $0xb0] sm:$0xf]
    %v113 = vld [vmem:[#allocation2 + $0xb4] sm:$0xf]
    %v114 = vld [vmem:[#allocation2 + $0xb8] sm:$0xf]
    %v115 = vld [vmem:[#allocation2 + $0xbc] sm:$0xf]
    %v116 = vld [vmem:[#allocation2 + $0xc0] sm:$0xf]
    %v117 = vld [vmem:[#allocation2 + $0xc4] sm:$0xf]
    %v118 = vld [vmem:[#allocation2 + $0xc8] sm:$0xf]
    %v119 = vld [vmem:[#allocation2 + $0xcc] sm:$0xf]
    %v120 = vld [vmem:[#allocation2 + $0xd0] sm:$0xf]
    %v121 = vld [vmem:[#allocation2 + $0xd4] sm:$0xf]
    %v122 = vld [vmem:[#allocation2 + $0xd8] sm:$0xf]
    %v123 = vld [vmem:[#allocation2 + $0xdc] sm:$0xf]
    %v124 = vld [vmem:[#allocation2 + $0xe0] sm:$0xf]
    %v125 = vld [vmem:[#allocation2 + $0xe4] sm:$0xf]
    %v126 = vld [vmem:[#allocation2 + $0xe8] sm:$0xf]
    %v127 = vld [vmem:[#allocation2 + $0xec] sm:$0xf]
    %v128 = vld [vmem:[#allocation2 + $0xf0] sm:$0xf]
    %v129 = vld [vmem:[#allocation2 + $0xf4] sm:$0xf]
    %v130 = vld [vmem:[#allocation2 + $0xf8] sm:$0xf]
    %v131 = vld [vmem:[#allocation2 + $0xfc] sm:$0xf]
    %v132 = vld [vmem:[#allocation2 + $0x100] sm:$0xf]
    %v133 = vld [vmem:[#allocation2 + $0x104] sm:$0xf]
    %v134 = vld [vmem:[#allocation2 + $0x108] sm:$0xf]
    %v135 = vld [vmem:[#allocation2 + $0x10c] sm:$0xf]
    %v136 = vld [vmem:[#allocation2 + $0x110] sm:$0xf]
    %v137 = vld [vmem:[#allocation2 + $0x114] sm:$0xf]
    %v138 = vld [vmem:[#allocation2 + $0x118] sm:$0xf]
    %v139 = vld [vmem:[#allocation2 + $0x11c] sm:$0xf]
    %v140 = vld [vmem:[#allocation2 + $0x120] sm:$0xf]
    %v141 = vld [vmem:[#allocation2 + $0x124] sm:$0xf]
    %v142 = vld [vmem:[#allocation2 + $0x128] sm:$0xf]
    %v143 = vld [vmem:[#allocation2 + $0x12c] sm:$0xf]
    %v144 = vld [vmem:[#allocation2 + $0x130] sm:$0xf]
    %v145 = vld [vmem:[#allocation2 + $0x134] sm:$0xf]
    %v146 = vld [vmem:[#allocation2 + $0x138] sm:$0xf]
    %v147 = vld [vmem:[#allocation2 + $0x13c] sm:$0xf]
    %v148 = vld [vmem:[#allocation2 + $0x140] sm:$0xf]
    %v149 = vld [vmem:[#allocation2 + $0x144] sm:$0xf]
    %v150 = vld [vmem:[#allocation2 + $0x148] sm:$0xf]
    %v151 = vld [vmem:[#allocation2 + $0x14c] sm:$0xf]
    %v152 = vld [vmem:[#allocation2 + $0x150] sm:$0xf]
    %v153 = vld [vmem:[#allocation2 + $0x154] sm:$0xf]
    %v154 = vld [vmem:[#allocation2 + $0x158] sm:$0xf]
    %v155 = vld [vmem:[#allocation2 + $0x15c] sm:$0xf]
    %v156 = vld [vmem:[#allocation2 + $0x160] sm:$0xf]
    %v157 = vld [vmem:[#allocation2 + $0x164] sm:$0xf]
    %v158 = vld [vmem:[#allocation2 + $0x168] sm:$0xf]
    %v159 = vld [vmem:[#allocation2 + $0x16c] sm:$0xf]
    %v160 = vld [vmem:[#allocation2 + $0x170] sm:$0xf]
    %v161 = vld [vmem:[#allocation2 + $0x174] sm:$0xf]
    %v162 = vld [vmem:[#allocation2 + $0x178] sm:$0xf]
    %v163 = vld [vmem:[#allocation2 + $0x17c] sm:$0xf]
    %v164 = vld [vmem:[#allocation2 + $0x180] sm:$0xf]
    %v165 = vld [vmem:[#allocation2 + $0x184] sm:$0xf]
    %v166 = vld [vmem:[#allocation2 + $0x188] sm:$0xf]
    %v167 = vld [vmem:[#allocation2 + $0x18c] sm:$0xf]
    %v168 = vld [vmem:[#allocation2 + $0x190] sm:$0xf]
    %v169 = vld [vmem:[#allocation2 + $0x194] sm:$0xf]
    %v170 = vld [vmem:[#allocation2 + $0x198] sm:$0xf]
    %v171 = vld [vmem:[#allocation2 + $0x19c] sm:$0xf]
    %v172 = vld [vmem:[#allocation2 + $0x1a0] sm:$0xf]
    %v173 = vld [vmem:[#allocation2 + $0x1a4] sm:$0xf]
    %v174 = vld [vmem:[#allocation2 + $0x1a8] sm:$0xf]
    %v175 = vld [vmem:[#allocation2 + $0x1ac] sm:$0xf]
    %v176 = vld [vmem:[#allocation2 + $0x1b0] sm:$0xf]
    %v177 = vld [vmem:[#allocation2 + $0x1b4] sm:$0xf]
    %v178 = vld [vmem:[#allocation2 + $0x1b8] sm:$0xf]
    %v179 = vld [vmem:[#allocation2 + $0x1bc] sm:$0xf]
    %v180 = vld [vmem:[#allocation2 + $0x1c0] sm:$0xf]
    %v181 = vld [vmem:[#allocation2 + $0x1c4] sm:$0xf]
    %v182 = vld [vmem:[#allocation2 + $0x1c8] sm:$0xf]
    %v183 = vld [vmem:[#allocation2 + $0x1cc] sm:$0xf]
    %v184 = vld [vmem:[#allocation2 + $0x1d0] sm:$0xf]
    %v185 = vld [vmem:[#allocation2 + $0x1d4] sm:$0xf]
    %v186 = vld [vmem:[#allocation2 + $0x1d8] sm:$0xf]
    %v187 = vld [vmem:[#allocation2 + $0x1dc] sm:$0xf]
    %v188 = vld [vmem:[#allocation2 + $0x1e0] sm:$0xf]
    %v189 = vld [vmem:[#allocation2 + $0x1e4] sm:$0xf]
    %v190 = vld [vmem:[#allocation2 + $0x1e8] sm:$0xf]
    %v191 = vld [vmem:[#allocation2 + $0x1ec] sm:$0xf]
    %v192 = vld [vmem:[#allocation2 + $0x1f0] sm:$0xf]
    %v193 = vld [vmem:[#allocation2 + $0x1f4] sm:$0xf]
    %v194 = vld [vmem:[#allocation2 + $0x1f8] sm:$0xf]
    %v195 = vld [vmem:[#allocation2 + $0x1fc] sm:$0xf]
    %v196 = vld [vmem:[%s3] sm:$0x1]
    %v197 = vlaneseq
    %v198 = vshrl.u32 %v197, 7
    %v199 = vsub.s32 0, %v198
    %v200 = vrot.slane %v196, %v199
    %v205 = vunpack.c.l.b16 %v64
    %v206 = vunpack.c.h.b16 %v64
    %v207 = vunpack.c.l.b16 %v65
    %v208 = vunpack.c.h.b16 %v65
    %v209 = vunpack.c.l.b16 %v66
    %v210 = vunpack.c.h.b16 %v66
    %v211 = vunpack.c.l.b16 %v67
    %v212 = vunpack.c.h.b16 %v67
    %v213 = vpack.c.b16 %v205, %v205
    %v214 = vpack.c.b16 %v206, %v206
    %v215 = vpack.c.b16 %v207, %v207
    %v216 = vpack.c.b16 %v208, %v208
    %v217 = vpack.c.b16 %v209, %v209
    %v218 = vpack.c.b16 %v210, %v210
    %v219 = vpack.c.b16 %v211, %v211
    %v220 = vpack.c.b16 %v212, %v212
    %v357 = vunpack.c.l.b16 %v68
    %v358 = vunpack.c.l.b16 %v69
    %v359 = vunpack.c.l.b16 %v70
    %v360 = vunpack.c.l.b16 %v71
    %v361 = vunpack.c.l.b16 %v72
    %v362 = vunpack.c.l.b16 %v73
    %v363 = vunpack.c.l.b16 %v74
    %v364 = vunpack.c.l.b16 %v75
    %v365 = vunpack.c.l.b16 %v76
    %v366 = vunpack.c.l.b16 %v77
    %v367 = vunpack.c.l.b16 %v78
    %v368 = vunpack.c.l.b16 %v79
    %v369 = vunpack.c.l.b16 %v80
    %v370 = vunpack.c.l.b16 %v81
    %v371 = vunpack.c.l.b16 %v82
    %v372 = vunpack.c.l.b16 %v83
    %v373 = vunpack.c.l.b16 %v84
    %v374 = vunpack.c.l.b16 %v85
    %v375 = vunpack.c.l.b16 %v86
    %v376 = vunpack.c.l.b16 %v87
    %v377 = vunpack.c.l.b16 %v88
    %v378 = vunpack.c.l.b16 %v89
    %v379 = vunpack.c.l.b16 %v90
    %v380 = vunpack.c.l.b16 %v91
    %v381 = vunpack.c.l.b16 %v92
    %v382 = vunpack.c.l.b16 %v93
    %v383 = vunpack.c.l.b16 %v94
    %v384 = vunpack.c.l.b16 %v95
    %v385 = vunpack.c.l.b16 %v96
    %v386 = vunpack.c.l.b16 %v97
    %v387 = vunpack.c.l.b16 %v98
    %v388 = vunpack.c.l.b16 %v99
    %v389 = vunpack.c.l.b16 %v100
    %v390 = vunpack.c.l.b16 %v101
    %v391 = vunpack.c.l.b16 %v102
    %v392 = vunpack.c.l.b16 %v103
    %v393 = vunpack.c.l.b16 %v104
    %v394 = vunpack.c.l.b16 %v105
    %v395 = vunpack.c.l.b16 %v106
    %v396 = vunpack.c.l.b16 %v107
    %v397 = vunpack.c.l.b16 %v108
    %v398 = vunpack.c.l.b16 %v109
    %v399 = vunpack.c.l.b16 %v110
    %v400 = vunpack.c.l.b16 %v111
    %v401 = vunpack.c.l.b16 %v112
    %v402 = vunpack.c.l.b16 %v113
    %v403 = vunpack.c.l.b16 %v114
    %v404 = vunpack.c.l.b16 %v115
    %v405 = vunpack.c.l.b16 %v116
    %v406 = vunpack.c.l.b16 %v117
    %v407 = vunpack.c.l.b16 %v118
    %v408 = vunpack.c.l.b16 %v119
    %v409 = vunpack.c.l.b16 %v120
    %v410 = vunpack.c.l.b16 %v121
    %v411 = vunpack.c.l.b16 %v122
    %v412 = vunpack.c.l.b16 %v123
    %v413 = vunpack.c.l.b16 %v124
    %v414 = vunpack.c.l.b16 %v125
    %v415 = vunpack.c.l.b16 %v126
    %v416 = vunpack.c.l.b16 %v127
    %v417 = vunpack.c.l.b16 %v128
    %v418 = vunpack.c.l.b16 %v129
    %v419 = vunpack.c.l.b16 %v130
    %v420 = vunpack.c.l.b16 %v131
    %v421 = vunpack.c.l.b16 %v132
    %v422 = vunpack.c.l.b16 %v133
    %v423 = vunpack.c.l.b16 %v134
    %v424 = vunpack.c.l.b16 %v135
    %v425 = vunpack.c.l.b16 %v136
    %v426 = vunpack.c.l.b16 %v137
    %v427 = vunpack.c.l.b16 %v138
    %v428 = vunpack.c.l.b16 %v139
    %v429 = vunpack.c.l.b16 %v140
    %v430 = vunpack.c.l.b16 %v141
    %v431 = vunpack.c.l.b16 %v142
    %v432 = vunpack.c.l.b16 %v143
    %v433 = vunpack.c.l.b16 %v144
    %v434 = vunpack.c.l.b16 %v145
    %v435 = vunpack.c.l.b16 %v146
    %v436 = vunpack.c.l.b16 %v147
    %v437 = vunpack.c.l.b16 %v148
    %v438 = vunpack.c.l.b16 %v149
    %v439 = vunpack.c.l.b16 %v150
    %v440 = vunpack.c.l.b16 %v151
    %v441 = vunpack.c.l.b16 %v152
    %v442 = vunpack.c.l.b16 %v153
    %v443 = vunpack.c.l.b16 %v154
    %v444 = vunpack.c.l.b16 %v155
    %v445 = vunpack.c.l.b16 %v156
    %v446 = vunpack.c.l.b16 %v157
    %v447 = vunpack.c.l.b16 %v158
    %v448 = vunpack.c.l.b16 %v159
    %v449 = vunpack.c.l.b16 %v160
    %v450 = vunpack.c.l.b16 %v161
    %v451 = vunpack.c.l.b16 %v162
    %v452 = vunpack.c.l.b16 %v163
    %v453 = vunpack.c.l.b16 %v164
    %v454 = vunpack.c.l.b16 %v165
    %v455 = vunpack.c.l.b16 %v166
    %v456 = vunpack.c.l.b16 %v167
    %v457 = vunpack.c.l.b16 %v168
    %v458 = vunpack.c.l.b16 %v169
    %v459 = vunpack.c.l.b16 %v170
    %v460 = vunpack.c.l.b16 %v171
    %v461 = vunpack.c.l.b16 %v172
    %v462 = vunpack.c.l.b16 %v173
    %v463 = vunpack.c.l.b16 %v174
    %v464 = vunpack.c.l.b16 %v175
    %v465 = vunpack.c.l.b16 %v176
    %v466 = vunpack.c.l.b16 %v177
    %v467 = vunpack.c.l.b16 %v178
    %v468 = vunpack.c.l.b16 %v179
    %v469 = vunpack.c.l.b16 %v180
    %v470 = vunpack.c.l.b16 %v181
    %v471 = vunpack.c.l.b16 %v182
    %v472 = vunpack.c.l.b16 %v183
    %v473 = vunpack.c.l.b16 %v184
    %v474 = vunpack.c.l.b16 %v185
    %v475 = vunpack.c.l.b16 %v186
    %v476 = vunpack.c.l.b16 %v187
    %v477 = vunpack.c.l.b16 %v188
    %v478 = vunpack.c.l.b16 %v189
    %v479 = vunpack.c.l.b16 %v190
    %v480 = vunpack.c.l.b16 %v191
    %v481 = vunpack.c.l.b16 %v192
    %v482 = vunpack.c.l.b16 %v193
    %v483 = vunpack.c.l.b16 %v194
    %v484 = vunpack.c.l.b16 %v195
    %v485 = vpack.c.b16 %v358, %v357
    %v486 = vpack.c.b16 %v360, %v359
    %v487 = vpack.c.b16 %v362, %v361
    %v488 = vpack.c.b16 %v364, %v363
    %v489 = vpack.c.b16 %v366, %v365
    %v490 = vpack.c.b16 %v368, %v367
    %v491 = vpack.c.b16 %v370, %v369
    %v492 = vpack.c.b16 %v372, %v371
    %v493 = vpack.c.b16 %v374, %v373
    %v494 = vpack.c.b16 %v376, %v375
    %v495 = vpack.c.b16 %v378, %v377
    %v496 = vpack.c.b16 %v380, %v379
    %v497 = vpack.c.b16 %v382, %v381
    %v498 = vpack.c.b16 %v384, %v383
    %v499 = vpack.c.b16 %v386, %v385
    %v500 = vpack.c.b16 %v388, %v387
    %v501 = vpack.c.b16 %v390, %v389
    %v502 = vpack.c.b16 %v392, %v391
    %v503 = vpack.c.b16 %v394, %v393
    %v504 = vpack.c.b16 %v396, %v395
    %v505 = vpack.c.b16 %v398, %v397
    %v506 = vpack.c.b16 %v400, %v399
    %v507 = vpack.c.b16 %v402, %v401
    %v508 = vpack.c.b16 %v404, %v403
    %v509 = vpack.c.b16 %v406, %v405
    %v510 = vpack.c.b16 %v408, %v407
    %v511 = vpack.c.b16 %v410, %v409
    %v512 = vpack.c.b16 %v412, %v411
    %v513 = vpack.c.b16 %v414, %v413
    %v514 = vpack.c.b16 %v416, %v415
    %v515 = vpack.c.b16 %v418, %v417
    %v516 = vpack.c.b16 %v420, %v419
    %v517 = vpack.c.b16 %v422, %v421
    %v518 = vpack.c.b16 %v424, %v423
    %v519 = vpack.c.b16 %v426, %v425
    %v520 = vpack.c.b16 %v428, %v427
    %v521 = vpack.c.b16 %v430, %v429
    %v522 = vpack.c.b16 %v432, %v431
    %v523 = vpack.c.b16 %v434, %v433
    %v524 = vpack.c.b16 %v436, %v435
    %v525 = vpack.c.b16 %v438, %v437
    %v526 = vpack.c.b16 %v440, %v439
    %v527 = vpack.c.b16 %v442, %v441
    %v528 = vpack.c.b16 %v444, %v443
    %v529 = vpack.c.b16 %v446, %v445
    %v530 = vpack.c.b16 %v448, %v447
    %v531 = vpack.c.b16 %v450, %v449
    %v532 = vpack.c.b16 %v452, %v451
    %v533 = vpack.c.b16 %v454, %v453
    %v534 = vpack.c.b16 %v456, %v455
    %v535 = vpack.c.b16 %v458, %v457
    %v536 = vpack.c.b16 %v460, %v459
    %v537 = vpack.c.b16 %v462, %v461
    %v538 = vpack.c.b16 %v464, %v463
    %v539 = vpack.c.b16 %v466, %v465
    %v540 = vpack.c.b16 %v468, %v467
    %v541 = vpack.c.b16 %v470, %v469
    %v542 = vpack.c.b16 %v472, %v471
    %v543 = vpack.c.b16 %v474, %v473
    %v544 = vpack.c.b16 %v476, %v475
    %v545 = vpack.c.b16 %v478, %v477
    %v546 = vpack.c.b16 %v480, %v479
    %v547 = vpack.c.b16 %v482, %v481
    %v548 = vpack.c.b16 %v484, %v483
    %613 = vmatprep.subr.bf16.mxu0 0
    %614 = vmatpush1.bf16.msra.mxu0 %v485
    %615 = vmatprep.subr.bf16.mxu0 0
    %616 = vmatpush1.bf16.msra.mxu0 %v486
    %617 = vmatprep.subr.bf16.mxu0 0
    %618 = vmatpush1.bf16.msra.mxu0 %v487
    %619 = vmatprep.subr.bf16.mxu0 0
    %620 = vmatpush1.bf16.msra.mxu0 %v488
    %621 = vmatprep.subr.bf16.mxu0 0
    %622 = vmatpush1.bf16.msra.mxu0 %v489
    %623 = vmatprep.subr.bf16.mxu0 0
    %624 = vmatpush1.bf16.msra.mxu0 %v490
    %625 = vmatprep.subr.bf16.mxu0 0
    %626 = vmatpush1.bf16.msra.mxu0 %v491
    %627 = vmatprep.subr.bf16.mxu0 0
    %628 = vmatpush1.bf16.msra.mxu0 %v492
    %629 = vmatprep.subr.bf16.mxu0 0
    %630 = vmatpush1.bf16.msra.mxu0 %v493
    %631 = vmatprep.subr.bf16.mxu0 0
    %632 = vmatpush1.bf16.msra.mxu0 %v494
    %633 = vmatprep.subr.bf16.mxu0 0
    %634 = vmatpush1.bf16.msra.mxu0 %v495
    %635 = vmatprep.subr.bf16.mxu0 0
    %636 = vmatpush1.bf16.msra.mxu0 %v496
    %637 = vmatprep.subr.bf16.mxu0 0
    %638 = vmatpush1.bf16.msra.mxu0 %v497
    %639 = vmatprep.subr.bf16.mxu0 0
    %640 = vmatpush1.bf16.msra.mxu0 %v498
    %641 = vmatprep.subr.bf16.mxu0 0
    %642 = vmatpush1.bf16.msra.mxu0 %v499
    %643 = vmatprep.subr.bf16.mxu0 0
    %644 = vmatpush1.bf16.msra.mxu0 %v500
    %645 = vmatprep.mubr.bf16.mxu0 %v214
    %646 = vmatmul.mubr.bf16.gmra.mrb[0].mxu0 %v213
    %v647 = vpop.f32.mrb[0].mxu0
    %v648 = vadd.f32 %v200, %v647
    %v649 = vpop.f32.mrb[0].mxu0
    %v650 = vpop.f32.mrb[0].mxu0
    %v651 = vpop.f32.mrb[0].mxu0
    %652 = vdwg.mxu0
    %653 = vmatprep.subr.bf16.mxu0 0
    %654 = vmatpush1.bf16.msra.mxu0 %v501
    %655 = vmatprep.subr.bf16.mxu0 0
    %656 = vmatpush1.bf16.msra.mxu0 %v502
    %657 = vmatprep.subr.bf16.mxu0 0
    %658 = vmatpush1.bf16.msra.mxu0 %v503
    %659 = vmatprep.subr.bf16.mxu0 0
    %660 = vmatpush1.bf16.msra.mxu0 %v504
    %661 = vmatprep.subr.bf16.mxu0 0
    %662 = vmatpush1.bf16.msra.mxu0 %v505
    %663 = vmatprep.subr.bf16.mxu0 0
    %664 = vmatpush1.bf16.msra.mxu0 %v506
    %665 = vmatprep.subr.bf16.mxu0 0
    %666 = vmatpush1.bf16.msra.mxu0 %v507
    %667 = vmatprep.subr.bf16.mxu0 0
    %668 = vmatpush1.bf16.msra.mxu0 %v508
    %669 = vmatprep.subr.bf16.mxu0 0
    %670 = vmatpush1.bf16.msra.mxu0 %v509
    %671 = vmatprep.subr.bf16.mxu0 0
    %672 = vmatpush1.bf16.msra.mxu0 %v510
    %673 = vmatprep.subr.bf16.mxu0 0
    %674 = vmatpush1.bf16.msra.mxu0 %v511
    %675 = vmatprep.subr.bf16.mxu0 0
    %676 = vmatpush1.bf16.msra.mxu0 %v512
    %677 = vmatprep.subr.bf16.mxu0 0
    %678 = vmatpush1.bf16.msra.mxu0 %v513
    %679 = vmatprep.subr.bf16.mxu0 0
    %680 = vmatpush1.bf16.msra.mxu0 %v514
    %681 = vmatprep.subr.bf16.mxu0 0
    %682 = vmatpush1.bf16.msra.mxu0 %v515
    %683 = vmatprep.subr.bf16.mxu0 0
    %684 = vmatpush1.bf16.msra.mxu0 %v516
    %685 = vmatprep.mubr.bf16.mxu0 %v216
    %686 = vmatmul.mubr.bf16.gmra.mrb[0].mxu0 %v215
    %v687 = vpop.f32.mrb[0].mxu0
    %v688 = vadd.f32 %v648, %v687
    %v689 = vpop.f32.mrb[0].mxu0
    %v690 = vpop.f32.mrb[0].mxu0
    %v691 = vpop.f32.mrb[0].mxu0
    %692 = vdwg.mxu0
    %693 = vmatprep.subr.bf16.mxu0 0
    %694 = vmatpush1.bf16.msra.mxu0 %v517
    %695 = vmatprep.subr.bf16.mxu0 0
    %696 = vmatpush1.bf16.msra.mxu0 %v518
    %697 = vmatprep.subr.bf16.mxu0 0
    %698 = vmatpush1.bf16.msra.mxu0 %v519
    %699 = vmatprep.subr.bf16.mxu0 0
    %700 = vmatpush1.bf16.msra.mxu0 %v520
    %701 = vmatprep.subr.bf16.mxu0 0
    %702 = vmatpush1.bf16.msra.mxu0 %v521
    %703 = vmatprep.subr.bf16.mxu0 0
    %704 = vmatpush1.bf16.msra.mxu0 %v522
    %705 = vmatprep.subr.bf16.mxu0 0
    %706 = vmatpush1.bf16.msra.mxu0 %v523
    %707 = vmatprep.subr.bf16.mxu0 0
    %708 = vmatpush1.bf16.msra.mxu0 %v524
    %709 = vmatprep.subr.bf16.mxu0 0
    %710 = vmatpush1.bf16.msra.mxu0 %v525
    %711 = vmatprep.subr.bf16.mxu0 0
    %712 = vmatpush1.bf16.msra.mxu0 %v526
    %713 = vmatprep.subr.bf16.mxu0 0
    %714 = vmatpush1.bf16.msra.mxu0 %v527
    %715 = vmatprep.subr.bf16.mxu0 0
    %716 = vmatpush1.bf16.msra.mxu0 %v528
    %717 = vmatprep.subr.bf16.mxu0 0
    %718 = vmatpush1.bf16.msra.mxu0 %v529
    %719 = vmatprep.subr.bf16.mxu0 0
    %720 = vmatpush1.bf16.msra.mxu0 %v530
    %721 = vmatprep.subr.bf16.mxu0 0
    %722 = vmatpush1.bf16.msra.mxu0 %v531
    %723 = vmatprep.subr.bf16.mxu0 0
    %724 = vmatpush1.bf16.msra.mxu0 %v532
    %725 = vmatprep.mubr.bf16.mxu0 %v218
    %726 = vmatmul.mubr.bf16.gmra.mrb[0].mxu0 %v217
    %v727 = vpop.f32.mrb[0].mxu0
    %v728 = vadd.f32 %v688, %v727
    %v729 = vpop.f32.mrb[0].mxu0
    %v730 = vpop.f32.mrb[0].mxu0
    %v731 = vpop.f32.mrb[0].mxu0
    %732 = vdwg.mxu0
    %733 = vmatprep.subr.bf16.mxu0 0
    %734 = vmatpush1.bf16.msra.mxu0 %v533
    %735 = vmatprep.subr.bf16.mxu0 0
    %736 = vmatpush1.bf16.msra.mxu0 %v534
    %737 = vmatprep.subr.bf16.mxu0 0
    %738 = vmatpush1.bf16.msra.mxu0 %v535
    %739 = vmatprep.subr.bf16.mxu0 0
    %740 = vmatpush1.bf16.msra.mxu0 %v536
    %741 = vmatprep.subr.bf16.mxu0 0
    %742 = vmatpush1.bf16.msra.mxu0 %v537
    %743 = vmatprep.subr.bf16.mxu0 0
    %744 = vmatpush1.bf16.msra.mxu0 %v538
    %745 = vmatprep.subr.bf16.mxu0 0
    %746 = vmatpush1.bf16.msra.mxu0 %v539
    %747 = vmatprep.subr.bf16.mxu0 0
    %748 = vmatpush1.bf16.msra.mxu0 %v540
    %749 = vmatprep.subr.bf16.mxu0 0
    %750 = vmatpush1.bf16.msra.mxu0 %v541
    %751 = vmatprep.subr.bf16.mxu0 0
    %752 = vmatpush1.bf16.msra.mxu0 %v542
    %753 = vmatprep.subr.bf16.mxu0 0
    %754 = vmatpush1.bf16.msra.mxu0 %v543
    %755 = vmatprep.subr.bf16.mxu0 0
    %756 = vmatpush1.bf16.msra.mxu0 %v544
    %757 = vmatprep.subr.bf16.mxu0 0
    %758 = vmatpush1.bf16.msra.mxu0 %v545
    %759 = vmatprep.subr.bf16.mxu0 0
    %760 = vmatpush1.bf16.msra.mxu0 %v546
    %761 = vmatprep.subr.bf16.mxu0 0
    %762 = vmatpush1.bf16.msra.mxu0 %v547
    %763 = vmatprep.subr.bf16.mxu0 0
    %764 = vmatpush1.bf16.msra.mxu0 %v548
    %765 = vmatprep.mubr.bf16.mxu0 %v220
    %766 = vmatmul.mubr.bf16.gmra.mrb[0].mxu0 %v219
    %v767 = vpop.f32.mrb[0].mxu0
    %v768 = vadd.f32 %v728, %v767
    %v769 = vpop.f32.mrb[0].mxu0
    %v770 = vpop.f32.mrb[0].mxu0
    %v771 = vpop.f32.mrb[0].mxu0
    %772 = vdwg.mxu0
    %v773 = vmax.f32 %v768, 0.0
    %v774 = vpack.c.bf16 %v773, %v773
    %v775 = vld [vmem:[%s4] sm:$0xff]
    %v776 = vld [vmem:[%s4 + $0x8] sm:$0xff]
    %v777 = vld [vmem:[%s4 + $0x10] sm:$0xff]
    %v778 = vld [vmem:[%s4 + $0x18] sm:$0xff]
    %v779 = vld [vmem:[%s4 + $0x20] sm:$0xff]
    %v780 = vld [vmem:[%s4 + $0x28] sm:$0xff]
    %v781 = vld [vmem:[%s4 + $0x30] sm:$0xff]
    %v782 = vld [vmem:[%s4 + $0x38] sm:$0xff]
    %v783 = vld [vmem:[%s4 + $0x40] sm:$0xff]
    %v784 = vld [vmem:[%s4 + $0x48] sm:$0xff]
    %v785 = vld [vmem:[%s4 + $0x50] sm:$0xff]
    %v786 = vld [vmem:[%s4 + $0x58] sm:$0xff]
    %v787 = vld [vmem:[%s4 + $0x60] sm:$0xff]
    %v788 = vld [vmem:[%s4 + $0x68] sm:$0xff]
    %v789 = vld [vmem:[%s4 + $0x70] sm:$0xff]
    %v790 = vld [vmem:[%s4 + $0x78] sm:$0xff]
    %v791 = vld [vmem:[%s5] sm:$0x3]
    %v793 = vlaneseq
    %v794 = vshrl.u32 %v793, 7
    %v795 = vsub.s32 0, %v794
    %v796 = vrot.slane %v791, %v795
    %v797 = vlaneseq
    %v798 = vshrl.u32 %v797, 7
    %v799 = vsub.s32 1, %v798
    %v800 = vrot.slane %v791, %v799
    %v819 = vunpack.c.l.b16 %v775
    %v820 = vunpack.c.h.b16 %v775
    %v821 = vunpack.c.l.b16 %v776
    %v822 = vunpack.c.h.b16 %v776
    %v823 = vunpack.c.l.b16 %v777
    %v824 = vunpack.c.h.b16 %v777
    %v825 = vunpack.c.l.b16 %v778
    %v826 = vunpack.c.h.b16 %v778
    %v827 = vunpack.c.l.b16 %v779
    %v828 = vunpack.c.h.b16 %v779
    %v829 = vunpack.c.l.b16 %v780
    %v830 = vunpack.c.h.b16 %v780
    %v831 = vunpack.c.l.b16 %v781
    %v832 = vunpack.c.h.b16 %v781
    %v833 = vunpack.c.l.b16 %v782
    %v834 = vunpack.c.h.b16 %v782
    %v835 = vunpack.c.l.b16 %v783
    %v836 = vunpack.c.h.b16 %v783
    %v837 = vunpack.c.l.b16 %v784
    %v838 = vunpack.c.h.b16 %v784
    %v839 = vunpack.c.l.b16 %v785
    %v840 = vunpack.c.h.b16 %v785
    %v841 = vunpack.c.l.b16 %v786
    %v842 = vunpack.c.h.b16 %v786
    %v843 = vunpack.c.l.b16 %v787
    %v844 = vunpack.c.h.b16 %v787
    %v845 = vunpack.c.l.b16 %v788
    %v846 = vunpack.c.h.b16 %v788
    %v847 = vunpack.c.l.b16 %v789
    %v848 = vunpack.c.h.b16 %v789
    %v849 = vunpack.c.l.b16 %v790
    %v850 = vunpack.c.h.b16 %v790
    %v851 = vpack.c.b16 %v821, %v819
    %v852 = vpack.c.b16 %v822, %v820
    %v853 = vpack.c.b16 %v825, %v823
    %v854 = vpack.c.b16 %v826, %v824
    %v855 = vpack.c.b16 %v829, %v827
    %v856 = vpack.c.b16 %v830, %v828
    %v857 = vpack.c.b16 %v833, %v831
    %v858 = vpack.c.b16 %v834, %v832
    %v859 = vpack.c.b16 %v837, %v835
    %v860 = vpack.c.b16 %v838, %v836
    %v861 = vpack.c.b16 %v841, %v839
    %v862 = vpack.c.b16 %v842, %v840
    %v863 = vpack.c.b16 %v845, %v843
    %v864 = vpack.c.b16 %v846, %v844
    %v865 = vpack.c.b16 %v849, %v847
    %v866 = vpack.c.b16 %v850, %v848
    %883 = vmatprep.subr.bf16.mxu0 %v852
    %884 = vmatpush1.bf16.msra.mxu0 %v851
    %885 = vmatprep.subr.bf16.mxu0 %v854
    %886 = vmatpush1.bf16.msra.mxu0 %v853
    %887 = vmatprep.subr.bf16.mxu0 %v856
    %888 = vmatpush1.bf16.msra.mxu0 %v855
    %889 = vmatprep.subr.bf16.mxu0 %v858
    %890 = vmatpush1.bf16.msra.mxu0 %v857
    %891 = vmatprep.subr.bf16.mxu0 %v860
    %892 = vmatpush1.bf16.msra.mxu0 %v859
    %893 = vmatprep.subr.bf16.mxu0 %v862
    %894 = vmatpush1.bf16.msra.mxu0 %v861
    %895 = vmatprep.subr.bf16.mxu0 %v864
    %896 = vmatpush1.bf16.msra.mxu0 %v863
    %897 = vmatprep.subr.bf16.mxu0 %v866
    %898 = vmatpush1.bf16.msra.mxu0 %v865
    %899 = vmatprep.subr.bf16.mxu0 0
    %900 = vmatpush1.bf16.msra.mxu0 0
    %901 = vmatprep.subr.bf16.mxu0 0
    %902 = vmatpush1.bf16.msra.mxu0 0
    %903 = vmatprep.subr.bf16.mxu0 0
    %904 = vmatpush1.bf16.msra.mxu0 0
    %905 = vmatprep.subr.bf16.mxu0 0
    %906 = vmatpush1.bf16.msra.mxu0 0
    %907 = vmatprep.subr.bf16.mxu0 0
    %908 = vmatpush1.bf16.msra.mxu0 0
    %909 = vmatprep.subr.bf16.mxu0 0
    %910 = vmatpush1.bf16.msra.mxu0 0
    %911 = vmatprep.subr.bf16.mxu0 0
    %912 = vmatpush1.bf16.msra.mxu0 0
    %913 = vmatprep.subr.bf16.mxu0 0
    %914 = vmatpush1.bf16.msra.mxu0 0
    %915 = vmatprep.mubr.bf16.mxu0 0
    %916 = vmatmul.mubr.bf16.gmra.mrb[0].mxu0 %v774
    %v917 = vpop.f32.mrb[0].mxu0
    %v918 = vadd.f32 %v796, %v917
    %v919 = vpop.f32.mrb[0].mxu0
    %v920 = vadd.f32 %v800, %v919
    %v921 = vpop.f32.mrb[0].mxu0
    %v922 = vpop.f32.mrb[0].mxu0
    %923 = vdwg.mxu0
    %v924 = vmul.f32 %v920, 0.5
    %v925 = vmul.f32 %v924, 1.442695
    %v926 = vpow.pop %v925
    %v927 = vld [vmem:[%s1] sm:$0xff]
    %v928 = vmul.f32 %v927, %v926
    %v929 = vadd.f32 %v928, %v918
    %v930 = vpack.c.bf16 %v929, %v929
    %v931 = vld [vmem:[%s6] sm:$0xf]
    %v932 = vld [vmem:[%s6 + $0x4] sm:$0xf]
    %v933 = vld [vmem:[%s6 + $0x8] sm:$0xf]
    %v934 = vld [vmem:[%s6 + $0xc] sm:$0xf]
    %v935 = vld [vmem:[%s6 + $0x10] sm:$0xf]
    %v936 = vld [vmem:[%s6 + $0x14] sm:$0xf]
    %v937 = vld [vmem:[%s6 + $0x18] sm:$0xf]
    %v938 = vld [vmem:[%s6 + $0x1c] sm:$0xf]
    %v939 = vld [vmem:[%s6 + $0x20] sm:$0xf]
    %v940 = vld [vmem:[%s6 + $0x24] sm:$0xf]
    %v941 = vld [vmem:[%s6 + $0x28] sm:$0xf]
    %v942 = vld [vmem:[%s6 + $0x2c] sm:$0xf]
    %v943 = vld [vmem:[%s6 + $0x30] sm:$0xf]
    %v944 = vld [vmem:[%s6 + $0x34] sm:$0xf]
    %v945 = vld [vmem:[%s6 + $0x38] sm:$0xf]
    %v946 = vld [vmem:[%s6 + $0x3c] sm:$0xf]
    %v947 = vld [vmem:[%s3 + $0x1] sm:$0x1]
    %v948 = vlaneseq
    %v949 = vshrl.u32 %v948, 7
    %v950 = vsub.s32 0, %v949
    %v951 = vrot.slane %v947, %v950
    %v968 = vunpack.c.l.b16 %v931
    %v969 = vunpack.c.l.b16 %v932
    %v970 = vunpack.c.l.b16 %v933
    %v971 = vunpack.c.l.b16 %v934
    %v972 = vunpack.c.l.b16 %v935
    %v973 = vunpack.c.l.b16 %v936
    %v974 = vunpack.c.l.b16 %v937
    %v975 = vunpack.c.l.b16 %v938
    %v976 = vunpack.c.l.b16 %v939
    %v977 = vunpack.c.l.b16 %v940
    %v978 = vunpack.c.l.b16 %v941
    %v979 = vunpack.c.l.b16 %v942
    %v980 = vunpack.c.l.b16 %v943
    %v981 = vunpack.c.l.b16 %v944
    %v982 = vunpack.c.l.b16 %v945
    %v983 = vunpack.c.l.b16 %v946
    %v984 = vpack.c.b16 %v969, %v968
    %v985 = vpack.c.b16 %v971, %v970
    %v986 = vpack.c.b16 %v973, %v972
    %v987 = vpack.c.b16 %v975, %v974
    %v988 = vpack.c.b16 %v977, %v976
    %v989 = vpack.c.b16 %v979, %v978
    %v990 = vpack.c.b16 %v981, %v980
    %v991 = vpack.c.b16 %v983, %v982
    %1000 = vmatprep.subr.bf16.mxu0 0
    %1001 = vmatpush1.bf16.msra.mxu0 %v984
    %1002 = vmatprep.subr.bf16.mxu0 0
    %1003 = vmatpush1.bf16.msra.mxu0 %v985
    %1004 = vmatprep.subr.bf16.mxu0 0
    %1005 = vmatpush1.bf16.msra.mxu0 %v986
    %1006 = vmatprep.subr.bf16.mxu0 0
    %1007 = vmatpush1.bf16.msra.mxu0 %v987
    %1008 = vmatprep.subr.bf16.mxu0 0
    %1009 = vmatpush1.bf16.msra.mxu0 %v988
    %1010 = vmatprep.subr.bf16.mxu0 0
    %1011 = vmatpush1.bf16.msra.mxu0 %v989
    %1012 = vmatprep.subr.bf16.mxu0 0
    %1013 = vmatpush1.bf16.msra.mxu0 %v990
    %1014 = vmatprep.subr.bf16.mxu0 0
    %1015 = vmatpush1.bf16.msra.mxu0 %v991
    %1016 = vmatprep.subr.bf16.mxu0 0
    %1017 = vmatpush1.bf16.msra.mxu0 0
    %1018 = vmatprep.subr.bf16.mxu0 0
    %1019 = vmatpush1.bf16.msra.mxu0 0
    %1020 = vmatprep.subr.bf16.mxu0 0
    %1021 = vmatpush1.bf16.msra.mxu0 0
    %1022 = vmatprep.subr.bf16.mxu0 0
    %1023 = vmatpush1.bf16.msra.mxu0 0
    %1024 = vmatprep.subr.bf16.mxu0 0
    %1025 = vmatpush1.bf16.msra.mxu0 0
    %1026 = vmatprep.subr.bf16.mxu0 0
    %1027 = vmatpush1.bf16.msra.mxu0 0
    %1028 = vmatprep.subr.bf16.mxu0 0
    %1029 = vmatpush1.bf16.msra.mxu0 0
    %1030 = vmatprep.subr.bf16.mxu0 0
    %1031 = vmatpush1.bf16.msra.mxu0 0
    %1032 = vmatprep.mubr.bf16.mxu0 0
    %1033 = vmatmul.mubr.bf16.gmra.mrb[0].mxu0 %v930
    %v1034 = vpop.f32.mrb[0].mxu0
    %v1035 = vadd.f32 %v951, %v1034
    %v1036 = vpop.f32.mrb[0].mxu0
    %v1037 = vpop.f32.mrb[0].mxu0
    %v1038 = vpop.f32.mrb[0].mxu0
    %1039 = vdwg.mxu0
    %v1040 = vmax.f32 %v1035, 0.0
    %v1041 = vpack.c.bf16 %v1040, %v1040
    %v1042 = vld [vmem:[#allocation4] sm:$0xff]
    %v1043 = vld [vmem:[#allocation4 + $0x8] sm:$0xff]
    %v1044 = vld [vmem:[#allocation4 + $0x10] sm:$0xff]
    %v1045 = vld [vmem:[#allocation4 + $0x18] sm:$0xff]
    %v1046 = vld [vmem:[#allocation4 + $0x20] sm:$0xff]
    %v1047 = vld [vmem:[#allocation4 + $0x28] sm:$0xff]
    %v1048 = vld [vmem:[#allocation4 + $0x30] sm:$0xff]
    %v1049 = vld [vmem:[#allocation4 + $0x38] sm:$0xff]
    %v1050 = vld [vmem:[#allocation4 + $0x40] sm:$0xff]
    %v1051 = vld [vmem:[#allocation4 + $0x48] sm:$0xff]
    %v1052 = vld [vmem:[#allocation4 + $0x50] sm:$0xff]
    %v1053 = vld [vmem:[#allocation4 + $0x58] sm:$0xff]
    %v1054 = vld [vmem:[#allocation4 + $0x60] sm:$0xff]
    %v1055 = vld [vmem:[#allocation4 + $0x68] sm:$0xff]
    %v1056 = vld [vmem:[#allocation4 + $0x70] sm:$0xff]
    %v1057 = vld [vmem:[#allocation4 + $0x78] sm:$0xff]
    %v1058 = vld [vmem:[#allocation4 + $0x80] sm:$0xff]
    %v1059 = vld [vmem:[#allocation4 + $0x88] sm:$0xff]
    %v1060 = vld [vmem:[#allocation4 + $0x90] sm:$0xff]
    %v1061 = vld [vmem:[#allocation4 + $0x98] sm:$0xff]
    %v1062 = vld [vmem:[#allocation4 + $0xa0] sm:$0xff]
    %v1063 = vld [vmem:[#allocation4 + $0xa8] sm:$0xff]
    %v1064 = vld [vmem:[#allocation4 + $0xb0] sm:$0xff]
    %v1065 = vld [vmem:[#allocation4 + $0xb8] sm:$0xff]
    %v1066 = vld [vmem:[#allocation4 + $0xc0] sm:$0xff]
    %v1067 = vld [vmem:[#allocation4 + $0xc8] sm:$0xff]
    %v1068 = vld [vmem:[#allocation4 + $0xd0] sm:$0xff]
    %v1069 = vld [vmem:[#allocation4 + $0xd8] sm:$0xff]
    %v1070 = vld [vmem:[#allocation4 + $0xe0] sm:$0xff]
    %v1071 = vld [vmem:[#allocation4 + $0xe8] sm:$0xff]
    %v1072 = vld [vmem:[#allocation4 + $0xf0] sm:$0xff]
    %v1073 = vld [vmem:[#allocation4 + $0xf8] sm:$0xff]
    %v1074 = vld [vmem:[#allocation4 + $0x100] sm:$0xff]
    %v1075 = vld [vmem:[#allocation4 + $0x108] sm:$0xff]
    %v1076 = vld [vmem:[#allocation4 + $0x110] sm:$0xff]
    %v1077 = vld [vmem:[#allocation4 + $0x118] sm:$0xff]
    %v1078 = vld [vmem:[#allocation4 + $0x120] sm:$0xff]
    %v1079 = vld [vmem:[#allocation4 + $0x128] sm:$0xff]
    %v1080 = vld [vmem:[#allocation4 + $0x130] sm:$0xff]
    %v1081 = vld [vmem:[#allocation4 + $0x138] sm:$0xff]
    %v1082 = vld [vmem:[#allocation4 + $0x140] sm:$0xff]
    %v1083 = vld [vmem:[#allocation4 + $0x148] sm:$0xff]
    %v1084 = vld [vmem:[#allocation4 + $0x150] sm:$0xff]
    %v1085 = vld [vmem:[#allocation4 + $0x158] sm:$0xff]
    %v1086 = vld [vmem:[#allocation4 + $0x160] sm:$0xff]
    %v1087 = vld [vmem:[#allocation4 + $0x168] sm:$0xff]
    %v1088 = vld [vmem:[#allocation4 + $0x170] sm:$0xff]
    %v1089 = vld [vmem:[#allocation4 + $0x178] sm:$0xff]
    %v1090 = vld [vmem:[#allocation4 + $0x180] sm:$0xff]
    %v1091 = vld [vmem:[#allocation4 + $0x188] sm:$0xff]
    %v1092 = vld [vmem:[#allocation4 + $0x190] sm:$0xff]
    %v1093 = vld [vmem:[#allocation4 + $0x198] sm:$0xff]
    %v1094 = vld [vmem:[#allocation4 + $0x1a0] sm:$0xff]
    %v1095 = vld [vmem:[#allocation4 + $0x1a8] sm:$0xff]
    %v1096 = vld [vmem:[#allocation4 + $0x1b0] sm:$0xff]
    %v1097 = vld [vmem:[#allocation4 + $0x1b8] sm:$0xff]
    %v1098 = vld [vmem:[#allocation4 + $0x1c0] sm:$0xff]
    %v1099 = vld [vmem:[#allocation4 + $0x1c8] sm:$0xff]
    %v1100 = vld [vmem:[#allocation4 + $0x1d0] sm:$0xff]
    %v1101 = vld [vmem:[#allocation4 + $0x1d8] sm:$0xff]
    %v1102 = vld [vmem:[#allocation4 + $0x1e0] sm:$0xff]
    %v1103 = vld [vmem:[#allocation4 + $0x1e8] sm:$0xff]
    %v1104 = vld [vmem:[#allocation4 + $0x1f0] sm:$0xff]
    %v1105 = vld [vmem:[#allocation4 + $0x1f8] sm:$0xff]
    %v1106 = vld [vmem:[%s8] sm:$0xff]
    %v1108 = vlaneseq
    %v1109 = vshrl.u32 %v1108, 7
    %v1110 = vsub.s32 0, %v1109
    %v1111 = vrot.slane %v1106, %v1110
    %v1112 = vlaneseq
    %v1113 = vshrl.u32 %v1112, 7
    %v1114 = vsub.s32 1, %v1113
    %v1115 = vrot.slane %v1106, %v1114
    %v1116 = vlaneseq
    %v1117 = vshrl.u32 %v1116, 7
    %v1118 = vsub.s32 2, %v1117
    %v1119 = vrot.slane %v1106, %v1118
    %v1120 = vlaneseq
    %v1121 = vshrl.u32 %v1120, 7
    %v1122 = vsub.s32 3, %v1121
    %v1123 = vrot.slane %v1106, %v1122
    %v1124 = vlaneseq
    %v1125 = vshrl.u32 %v1124, 7
    %v1126 = vsub.s32 4, %v1125
    %v1127 = vrot.slane %v1106, %v1126
    %v1128 = vlaneseq
    %v1129 = vshrl.u32 %v1128, 7
    %v1130 = vsub.s32 5, %v1129
    %v1131 = vrot.slane %v1106, %v1130
    %v1132 = vlaneseq
    %v1133 = vshrl.u32 %v1132, 7
    %v1134 = vsub.s32 6, %v1133
    %v1135 = vrot.slane %v1106, %v1134
    %v1136 = vlaneseq
    %v1137 = vshrl.u32 %v1136, 7
    %v1138 = vsub.s32 7, %v1137
    %v1139 = vrot.slane %v1106, %v1138
    %v1212 = vunpack.c.l.b16 %v1042
    %v1213 = vunpack.c.h.b16 %v1042
    %v1214 = vunpack.c.l.b16 %v1043
    %v1215 = vunpack.c.h.b16 %v1043
    %v1216 = vunpack.c.l.b16 %v1044
    %v1217 = vunpack.c.h.b16 %v1044
    %v1218 = vunpack.c.l.b16 %v1045
    %v1219 = vunpack.c.h.b16 %v1045
    %v1220 = vunpack.c.l.b16 %v1046
    %v1221 = vunpack.c.h.b16 %v1046
    %v1222 = vunpack.c.l.b16 %v1047
    %v1223 = vunpack.c.h.b16 %v1047
    %v1224 = vunpack.c.l.b16 %v1048
    %v1225 = vunpack.c.h.b16 %v1048
    %v1226 = vunpack.c.l.b16 %v1049
    %v1227 = vunpack.c.h.b16 %v1049
    %v1228 = vunpack.c.l.b16 %v1050
    %v1229 = vunpack.c.h.b16 %v1050
    %v1230 = vunpack.c.l.b16 %v1051
    %v1231 = vunpack.c.h.b16 %v1051
    %v1232 = vunpack.c.l.b16 %v1052
    %v1233 = vunpack.c.h.b16 %v1052
    %v1234 = vunpack.c.l.b16 %v1053
    %v1235 = vunpack.c.h.b16 %v1053
    %v1236 = vunpack.c.l.b16 %v1054
    %v1237 = vunpack.c.h.b16 %v1054
    %v1238 = vunpack.c.l.b16 %v1055
    %v1239 = vunpack.c.h.b16 %v1055
    %v1240 = vunpack.c.l.b16 %v1056
    %v1241 = vunpack.c.h.b16 %v1056
    %v1242 = vunpack.c.l.b16 %v1057
    %v1243 = vunpack.c.h.b16 %v1057
    %v1244 = vunpack.c.l.b16 %v1058
    %v1245 = vunpack.c.h.b16 %v1058
    %v1246 = vunpack.c.l.b16 %v1059
    %v1247 = vunpack.c.h.b16 %v1059
    %v1248 = vunpack.c.l.b16 %v1060
    %v1249 = vunpack.c.h.b16 %v1060
    %v1250 = vunpack.c.l.b16 %v1061
    %v1251 = vunpack.c.h.b16 %v1061
    %v1252 = vunpack.c.l.b16 %v1062
    %v1253 = vunpack.c.h.b16 %v1062
    %v1254 = vunpack.c.l.b16 %v1063
    %v1255 = vunpack.c.h.b16 %v1063
    %v1256 = vunpack.c.l.b16 %v1064
    %v1257 = vunpack.c.h.b16 %v1064
    %v1258 = vunpack.c.l.b16 %v1065
    %v1259 = vunpack.c.h.b16 %v1065
    %v1260 = vunpack.c.l.b16 %v1066
    %v1261 = vunpack.c.h.b16 %v1066
    %v1262 = vunpack.c.l.b16 %v1067
    %v1263 = vunpack.c.h.b16 %v1067
    %v1264 = vunpack.c.l.b16 %v1068
    %v1265 = vunpack.c.h.b16 %v1068
    %v1266 = vunpack.c.l.b16 %v1069
    %v1267 = vunpack.c.h.b16 %v1069
    %v1268 = vunpack.c.l.b16 %v1070
    %v1269 = vunpack.c.h.b16 %v1070
    %v1270 = vunpack.c.l.b16 %v1071
    %v1271 = vunpack.c.h.b16 %v1071
    %v1272 = vunpack.c.l.b16 %v1072
    %v1273 = vunpack.c.h.b16 %v1072
    %v1274 = vunpack.c.l.b16 %v1073
    %v1275 = vunpack.c.h.b16 %v1073
    %v1276 = vunpack.c.l.b16 %v1074
    %v1277 = vunpack.c.h.b16 %v1074
    %v1278 = vunpack.c.l.b16 %v1075
    %v1279 = vunpack.c.h.b16 %v1075
    %v1280 = vunpack.c.l.b16 %v1076
    %v1281 = vunpack.c.h.b16 %v1076
    %v1282 = vunpack.c.l.b16 %v1077
    %v1283 = vunpack.c.h.b16 %v1077
    %v1284 = vunpack.c.l.b16 %v1078
    %v1285 = vunpack.c.h.b16 %v1078
    %v1286 = vunpack.c.l.b16 %v1079
    %v1287 = vunpack.c.h.b16 %v1079
    %v1288 = vunpack.c.l.b16 %v1080
    %v1289 = vunpack.c.h.b16 %v1080
    %v1290 = vunpack.c.l.b16 %v1081
    %v1291 = vunpack.c.h.b16 %v1081
    %v1292 = vunpack.c.l.b16 %v1082
    %v1293 = vunpack.c.h.b16 %v1082
    %v1294 = vunpack.c.l.b16 %v1083
    %v1295 = vunpack.c.h.b16 %v1083
    %v1296 = vunpack.c.l.b16 %v1084
    %v1297 = vunpack.c.h.b16 %v1084
    %v1298 = vunpack.c.l.b16 %v1085
    %v1299 = vunpack.c.h.b16 %v1085
    %v1300 = vunpack.c.l.b16 %v1086
    %v1301 = vunpack.c.h.b16 %v1086
    %v1302 = vunpack.c.l.b16 %v1087
    %v1303 = vunpack.c.h.b16 %v1087
    %v1304 = vunpack.c.l.b16 %v1088
    %v1305 = vunpack.c.h.b16 %v1088
    %v1306 = vunpack.c.l.b16 %v1089
    %v1307 = vunpack.c.h.b16 %v1089
    %v1308 = vunpack.c.l.b16 %v1090
    %v1309 = vunpack.c.h.b16 %v1090
    %v1310 = vunpack.c.l.b16 %v1091
    %v1311 = vunpack.c.h.b16 %v1091
    %v1312 = vunpack.c.l.b16 %v1092
    %v1313 = vunpack.c.h.b16 %v1092
    %v1314 = vunpack.c.l.b16 %v1093
    %v1315 = vunpack.c.h.b16 %v1093
    %v1316 = vunpack.c.l.b16 %v1094
    %v1317 = vunpack.c.h.b16 %v1094
    %v1318 = vunpack.c.l.b16 %v1095
    %v1319 = vunpack.c.h.b16 %v1095
    %v1320 = vunpack.c.l.b16 %v1096
    %v1321 = vunpack.c.h.b16 %v1096
    %v1322 = vunpack.c.l.b16 %v1097
    %v1323 = vunpack.c.h.b16 %v1097
    %v1324 = vunpack.c.l.b16 %v1098
    %v1325 = vunpack.c.h.b16 %v1098
    %v1326 = vunpack.c.l.b16 %v1099
    %v1327 = vunpack.c.h.b16 %v1099
    %v1328 = vunpack.c.l.b16 %v1100
    %v1329 = vunpack.c.h.b16 %v1100
    %v1330 = vunpack.c.l.b16 %v1101
    %v1331 = vunpack.c.h.b16 %v1101
    %v1332 = vunpack.c.l.b16 %v1102
    %v1333 = vunpack.c.h.b16 %v1102
    %v1334 = vunpack.c.l.b16 %v1103
    %v1335 = vunpack.c.h.b16 %v1103
    %v1336 = vunpack.c.l.b16 %v1104
    %v1337 = vunpack.c.h.b16 %v1104
    %v1338 = vunpack.c.l.b16 %v1105
    %v1339 = vunpack.c.h.b16 %v1105
    %v1340 = vpack.c.b16 %v1220, %v1212
    %v1341 = vpack.c.b16 %v1221, %v1213
    %v1342 = vpack.c.b16 %v1222, %v1214
    %v1343 = vpack.c.b16 %v1223, %v1215
    %v1344 = vpack.c.b16 %v1224, %v1216
    %v1345 = vpack.c.b16 %v1225, %v1217
    %v1346 = vpack.c.b16 %v1226, %v1218
    %v1347 = vpack.c.b16 %v1227, %v1219
    %v1348 = vpack.c.b16 %v1236, %v1228
    %v1349 = vpack.c.b16 %v1237, %v1229
    %v1350 = vpack.c.b16 %v1238, %v1230
    %v1351 = vpack.c.b16 %v1239, %v1231
    %v1352 = vpack.c.b16 %v1240, %v1232
    %v1353 = vpack.c.b16 %v1241, %v1233
    %v1354 = vpack.c.b16 %v1242, %v1234
    %v1355 = vpack.c.b16 %v1243, %v1235
    %v1356 = vpack.c.b16 %v1252, %v1244
    %v1357 = vpack.c.b16 %v1253, %v1245
    %v1358 = vpack.c.b16 %v1254, %v1246
    %v1359 = vpack.c.b16 %v1255, %v1247
    %v1360 = vpack.c.b16 %v1256, %v1248
    %v1361 = vpack.c.b16 %v1257, %v1249
    %v1362 = vpack.c.b16 %v1258, %v1250
    %v1363 = vpack.c.b16 %v1259, %v1251
    %v1364 = vpack.c.b16 %v1268, %v1260
    %v1365 = vpack.c.b16 %v1269, %v1261
    %v1366 = vpack.c.b16 %v1270, %v1262
    %v1367 = vpack.c.b16 %v1271, %v1263
    %v1368 = vpack.c.b16 %v1272, %v1264
    %v1369 = vpack.c.b16 %v1273, %v1265
    %v1370 = vpack.c.b16 %v1274, %v1266
    %v1371 = vpack.c.b16 %v1275, %v1267
    %v1372 = vpack.c.b16 %v1284, %v1276
    %v1373 = vpack.c.b16 %v1285, %v1277
    %v1374 = vpack.c.b16 %v1286, %v1278
    %v1375 = vpack.c.b16 %v1287, %v1279
    %v1376 = vpack.c.b16 %v1288, %v1280
    %v1377 = vpack.c.b16 %v1289, %v1281
    %v1378 = vpack.c.b16 %v1290, %v1282
    %v1379 = vpack.c.b16 %v1291, %v1283
    %v1380 = vpack.c.b16 %v1300, %v1292
    %v1381 = vpack.c.b16 %v1301, %v1293
    %v1382 = vpack.c.b16 %v1302, %v1294
    %v1383 = vpack.c.b16 %v1303, %v1295
    %v1384 = vpack.c.b16 %v1304, %v1296
    %v1385 = vpack.c.b16 %v1305, %v1297
    %v1386 = vpack.c.b16 %v1306, %v1298
    %v1387 = vpack.c.b16 %v1307, %v1299
    %v1388 = vpack.c.b16 %v1316, %v1308
    %v1389 = vpack.c.b16 %v1317, %v1309
    %v1390 = vpack.c.b16 %v1318, %v1310
    %v1391 = vpack.c.b16 %v1319, %v1311
    %v1392 = vpack.c.b16 %v1320, %v1312
    %v1393 = vpack.c.b16 %v1321, %v1313
    %v1394 = vpack.c.b16 %v1322, %v1314
    %v1395 = vpack.c.b16 %v1323, %v1315
    %v1396 = vpack.c.b16 %v1332, %v1324
    %v1397 = vpack.c.b16 %v1333, %v1325
    %v1398 = vpack.c.b16 %v1334, %v1326
    %v1399 = vpack.c.b16 %v1335, %v1327
    %v1400 = vpack.c.b16 %v1336, %v1328
    %v1401 = vpack.c.b16 %v1337, %v1329
    %v1402 = vpack.c.b16 %v1338, %v1330
    %v1403 = vpack.c.b16 %v1339, %v1331
    %1468 = vmatprep.subr.bf16.mxu0 %v1341
    %1469 = vmatpush1.bf16.msra.mxu0 %v1340
    %1470 = vmatprep.subr.bf16.mxu0 %v1349
    %1471 = vmatpush1.bf16.msra.mxu0 %v1348
    %1472 = vmatprep.subr.bf16.mxu0 %v1357
    %1473 = vmatpush1.bf16.msra.mxu0 %v1356
    %1474 = vmatprep.subr.bf16.mxu0 %v1365
    %1475 = vmatpush1.bf16.msra.mxu0 %v1364
    %1476 = vmatprep.subr.bf16.mxu0 %v1373
    %1477 = vmatpush1.bf16.msra.mxu0 %v1372
    %1478 = vmatprep.subr.bf16.mxu0 %v1381
    %1479 = vmatpush1.bf16.msra.mxu0 %v1380
    %1480 = vmatprep.subr.bf16.mxu0 %v1389
    %1481 = vmatpush1.bf16.msra.mxu0 %v1388
    %1482 = vmatprep.subr.bf16.mxu0 %v1397
    %1483 = vmatpush1.bf16.msra.mxu0 %v1396
    %1484 = vmatprep.subr.bf16.mxu0 0
    %1485 = vmatpush1.bf16.msra.mxu0 0
    %1486 = vmatprep.subr.bf16.mxu0 0
    %1487 = vmatpush1.bf16.msra.mxu0 0
    %1488 = vmatprep.subr.bf16.mxu0 0
    %1489 = vmatpush1.bf16.msra.mxu0 0
    %1490 = vmatprep.subr.bf16.mxu0 0
    %1491 = vmatpush1.bf16.msra.mxu0 0
    %1492 = vmatprep.subr.bf16.mxu0 0
    %1493 = vmatpush1.bf16.msra.mxu0 0
    %1494 = vmatprep.subr.bf16.mxu0 0
    %1495 = vmatpush1.bf16.msra.mxu0 0
    %1496 = vmatprep.subr.bf16.mxu0 0
    %1497 = vmatpush1.bf16.msra.mxu0 0
    %1498 = vmatprep.subr.bf16.mxu0 0
    %1499 = vmatpush1.bf16.msra.mxu0 0
    %1500 = vmatprep.mubr.bf16.mxu0 0
    %1501 = vmatmul.mubr.bf16.gmra.mrb[0].mxu0 %v1041
    %v1502 = vpop.f32.mrb[0].mxu0
    %v1503 = vadd.f32 %v1111, %v1502
    %v1504 = vpop.f32.mrb[0].mxu0
    %v1505 = vadd.f32 %v1115, %v1504
    %v1506 = vpop.f32.mrb[0].mxu0
    %v1507 = vpop.f32.mrb[0].mxu0
    %1508 = vdwg.mxu0
    %1509 = vmatprep.subr.bf16.mxu0 %v1343
    %1510 = vmatpush1.bf16.msra.mxu0 %v1342
    %1511 = vmatprep.subr.bf16.mxu0 %v1351
    %1512 = vmatpush1.bf16.msra.mxu0 %v1350
    %1513 = vmatprep.subr.bf16.mxu0 %v1359
    %1514 = vmatpush1.bf16.msra.mxu0 %v1358
    %1515 = vmatprep.subr.bf16.mxu0 %v1367
    %1516 = vmatpush1.bf16.msra.mxu0 %v1366
    %1517 = vmatprep.subr.bf16.mxu0 %v1375
    %1518 = vmatpush1.bf16.msra.mxu0 %v1374
    %1519 = vmatprep.subr.bf16.mxu0 %v1383
    %1520 = vmatpush1.bf16.msra.mxu0 %v1382
    %1521 = vmatprep.subr.bf16.mxu0 %v1391
    %1522 = vmatpush1.bf16.msra.mxu0 %v1390
    %1523 = vmatprep.subr.bf16.mxu0 %v1399
    %1524 = vmatpush1.bf16.msra.mxu0 %v1398
    %1525 = vmatprep.subr.bf16.mxu0 0
    %1526 = vmatpush1.bf16.msra.mxu0 0
    %1527 = vmatprep.subr.bf16.mxu0 0
    %1528 = vmatpush1.bf16.msra.mxu0 0
    %1529 = vmatprep.subr.bf16.mxu0 0
    %1530 = vmatpush1.bf16.msra.mxu0 0
    %1531 = vmatprep.subr.bf16.mxu0 0
    %1532 = vmatpush1.bf16.msra.mxu0 0
    %1533 = vmatprep.subr.bf16.mxu0 0
    %1534 = vmatpush1.bf16.msra.mxu0 0
    %1535 = vmatprep.subr.bf16.mxu0 0
    %1536 = vmatpush1.bf16.msra.mxu0 0
    %1537 = vmatprep.subr.bf16.mxu0 0
    %1538 = vmatpush1.bf16.msra.mxu0 0
    %1539 = vmatprep.subr.bf16.mxu0 0
    %1540 = vmatpush1.bf16.msra.mxu0 0
    %1541 = vmatprep.mubr.bf16.mxu0 0
    %1542 = vmatmul.mubr.bf16.gmra.mrb[0].mxu0 %v1041
    %v1543 = vpop.f32.mrb[0].mxu0
    %v1544 = vadd.f32 %v1119, %v1543
    %v1545 = vpop.f32.mrb[0].mxu0
    %v1546 = vadd.f32 %v1123, %v1545
    %v1547 = vpop.f32.mrb[0].mxu0
    %v1548 = vpop.f32.mrb[0].mxu0
    %1549 = vdwg.mxu0
    %1550 = vmatprep.subr.bf16.mxu0 %v1345
    %1551 = vmatpush1.bf16.msra.mxu0 %v1344
    %1552 = vmatprep.subr.bf16.mxu0 %v1353
    %1553 = vmatpush1.bf16.msra.mxu0 %v1352
    %1554 = vmatprep.subr.bf16.mxu0 %v1361
    %1555 = vmatpush1.bf16.msra.mxu0 %v1360
    %1556 = vmatprep.subr.bf16.mxu0 %v1369
    %1557 = vmatpush1.bf16.msra.mxu0 %v1368
    %1558 = vmatprep.subr.bf16.mxu0 %v1377
    %1559 = vmatpush1.bf16.msra.mxu0 %v1376
    %1560 = vmatprep.subr.bf16.mxu0 %v1385
    %1561 = vmatpush1.bf16.msra.mxu0 %v1384
    %1562 = vmatprep.subr.bf16.mxu0 %v1393
    %1563 = vmatpush1.bf16.msra.mxu0 %v1392
    %1564 = vmatprep.subr.bf16.mxu0 %v1401
    %1565 = vmatpush1.bf16.msra.mxu0 %v1400
    %1566 = vmatprep.subr.bf16.mxu0 0
    %1567 = vmatpush1.bf16.msra.mxu0 0
    %1568 = vmatprep.subr.bf16.mxu0 0
    %1569 = vmatpush1.bf16.msra.mxu0 0
    %1570 = vmatprep.subr.bf16.mxu0 0
    %1571 = vmatpush1.bf16.msra.mxu0 0
    %1572 = vmatprep.subr.bf16.mxu0 0
    %1573 = vmatpush1.bf16.msra.mxu0 0
    %1574 = vmatprep.subr.bf16.mxu0 0
    %1575 = vmatpush1.bf16.msra.mxu0 0
    %1576 = vmatprep.subr.bf16.mxu0 0
    %1577 = vmatpush1.bf16.msra.mxu0 0
    %1578 = vmatprep.subr.bf16.mxu0 0
    %1579 = vmatpush1.bf16.msra.mxu0 0
    %1580 = vmatprep.subr.bf16.mxu0 0
    %1581 = vmatpush1.bf16.msra.mxu0 0
    %1582 = vmatprep.mubr.bf16.mxu0 0
    %1583 = vmatmul.mubr.bf16.gmra.mrb[0].mxu0 %v1041
    %v1584 = vpop.f32.mrb[0].mxu0
    %v1585 = vadd.f32 %v1127, %v1584
    %v1586 = vpop.f32.mrb[0].mxu0
    %v1587 = vadd.f32 %v1131, %v1586
    %v1588 = vpop.f32.mrb[0].mxu0
    %v1589 = vpop.f32.mrb[0].mxu0
    %1590 = vdwg.mxu0
    %1591 = vmatprep.subr.bf16.mxu0 %v1347
    %1592 = vmatpush1.bf16.msra.mxu0 %v1346
    %1593 = vmatprep.subr.bf16.mxu0 %v1355
    %1594 = vmatpush1.bf16.msra.mxu0 %v1354
    %1595 = vmatprep.subr.bf16.mxu0 %v1363
    %1596 = vmatpush1.bf16.msra.mxu0 %v1362
    %1597 = vmatprep.subr.bf16.mxu0 %v1371
    %1598 = vmatpush1.bf16.msra.mxu0 %v1370
    %1599 = vmatprep.subr.bf16.mxu0 %v1379
    %1600 = vmatpush1.bf16.msra.mxu0 %v1378
    %1601 = vmatprep.subr.bf16.mxu0 %v1387
    %1602 = vmatpush1.bf16.msra.mxu0 %v1386
    %1603 = vmatprep.subr.bf16.mxu0 %v1395
    %1604 = vmatpush1.bf16.msra.mxu0 %v1394
    %1605 = vmatprep.subr.bf16.mxu0 %v1403
    %1606 = vmatpush1.bf16.msra.mxu0 %v1402
    %1607 = vmatprep.subr.bf16.mxu0 0
    %1608 = vmatpush1.bf16.msra.mxu0 0
    %1609 = vmatprep.subr.bf16.mxu0 0
    %1610 = vmatpush1.bf16.msra.mxu0 0
    %1611 = vmatprep.subr.bf16.mxu0 0
    %1612 = vmatpush1.bf16.msra.mxu0 0
    %1613 = vmatprep.subr.bf16.mxu0 0
    %1614 = vmatpush1.bf16.msra.mxu0 0
    %1615 = vmatprep.subr.bf16.mxu0 0
    %1616 = vmatpush1.bf16.msra.mxu0 0
    %1617 = vmatprep.subr.bf16.mxu0 0
    %1618 = vmatpush1.bf16.msra.mxu0 0
    %1619 = vmatprep.subr.bf16.mxu0 0
    %1620 = vmatpush1.bf16.msra.mxu0 0
    %1621 = vmatprep.subr.bf16.mxu0 0
    %1622 = vmatpush1.bf16.msra.mxu0 0
    %1623 = vmatprep.mubr.bf16.mxu0 0
    %1624 = vmatmul.mubr.bf16.gmra.mrb[0].mxu0 %v1041
    %v1625 = vpop.f32.mrb[0].mxu0
    %v1626 = vadd.f32 %v1135, %v1625
    %v1627 = vpop.f32.mrb[0].mxu0
    %v1628 = vadd.f32 %v1139, %v1627
    %v1629 = vpop.f32.mrb[0].mxu0
    %v1630 = vpop.f32.mrb[0].mxu0
    %1631 = vdwg.mxu0
    %v1632 = vsub.f32 0.0, %v1503
    %v1633 = vsub.f32 0.0, %v1505
    %v1634 = vsub.f32 0.0, %v1544
    %v1635 = vsub.f32 0.0, %v1546
    %v1636 = vsub.f32 0.0, %v1585
    %v1637 = vsub.f32 0.0, %v1587
    %v1638 = vsub.f32 0.0, %v1626
    %v1639 = vsub.f32 0.0, %v1628
    %v1640 = vmul.f32 %v1632, 1.442695
    %v1641 = vpow.pop %v1640
    %v1642 = vmul.f32 %v1633, 1.442695
    %v1643 = vpow.pop %v1642
    %v1644 = vmul.f32 %v1634, 1.442695
    %v1645 = vpow.pop %v1644
    %v1646 = vmul.f32 %v1635, 1.442695
    %v1647 = vpow.pop %v1646
    %v1648 = vmul.f32 %v1636, 1.442695
    %v1649 = vpow.pop %v1648
    %v1650 = vmul.f32 %v1637, 1.442695
    %v1651 = vpow.pop %v1650
    %v1652 = vmul.f32 %v1638, 1.442695
    %v1653 = vpow.pop %v1652
    %v1654 = vmul.f32 %v1639, 1.442695
    %v1655 = vpow.pop %v1654
    %v1656 = vadd.f32 %v1641, 1.0
    %v1657 = vadd.f32 %v1643, 1.0
    %v1658 = vadd.f32 %v1645, 1.0
    %v1659 = vadd.f32 %v1647, 1.0
    %v1660 = vadd.f32 %v1649, 1.0
    %v1661 = vadd.f32 %v1651, 1.0
    %v1662 = vadd.f32 %v1653, 1.0
    %v1663 = vadd.f32 %v1655, 1.0
    %v1664 = vrcp.pop %v1656
    %v1665 = vrcp.pop %v1657
    %v1666 = vrcp.pop %v1658
    %v1667 = vrcp.pop %v1659
    %v1668 = vrcp.pop %v1660
    %v1669 = vrcp.pop %v1661
    %v1670 = vrcp.pop %v1662
    %v1671 = vrcp.pop %v1663
    %1672 = vst [vmem:[%s9] sm:$0xff] %v1664
    %1673 = vst [vmem:[%s9 + $0x8] sm:$0xff] %v1665
    %1674 = vst [vmem:[%s9 + $0x10] sm:$0xff] %v1666
    %1675 = vst [vmem:[%s9 + $0x18] sm:$0xff] %v1667
    %1676 = vst [vmem:[%s9 + $0x20] sm:$0xff] %v1668
    %1677 = vst [vmem:[%s9 + $0x28] sm:$0xff] %v1669
    %1678 = vst [vmem:[%s9 + $0x30] sm:$0xff] %v1670
    %1679 = vst [vmem:[%s9 + $0x38] sm:$0xff] %v1671
    %1680 = vst [vmem:[%s10] sm:$0xff] %v918
    %1681 = vst [vmem:[%s11] sm:$0xff] %v920
    // Predicated region
    $region46: #{vae_forward.1} parent=1 // pred_check
      _
    $region47: #{vae_forward.1} parent=1 // pred_check_branch
      %1683 = sbr.rel (0) target = $region49
    $region48: #{vae_forward.1} parent=1 // pred_region
      _
    $region49: #{vae_forward.1} parent=1 // pred_fallthru
      _
    // Predicated region
    $region50: #{vae_forward.1} parent=1 // pred_check
      _
    $region51: #{vae_forward.1} parent=1 // pred_check_branch
      %1685 = sbr.rel (0) target = $region53
    $region52: #{vae_forward.1} parent=1 // pred_region
      _
    $region53: #{vae_forward.1} parent=1 // pred_fallthru
      _
    // Predicated region
    $region54: #{vae_forward.1} parent=1 // pred_check
      _
    $region55: #{vae_forward.1} parent=1 // pred_check_branch
      %1687 = sbr.rel (0) target = $region57
    $region56: #{vae_forward.1} parent=1 // pred_region
      _
    $region57: #{vae_forward.1} parent=1 // pred_fallthru
      _
    // Predicated region
    $region58: #{vae_forward.1} parent=1 // pred_check
      _
    $region59: #{vae_forward.1} parent=1 // pred_check_branch
      %1689 = sbr.rel (0) target = $region61
    $region60: #{vae_forward.1} parent=1 // pred_region
      _
    $region61: #{vae_forward.1} parent=1 // pred_fallthru
      _
    // Predicated region
    $region62: #{vae_forward.1} parent=1 // pred_check
      _
    $region63: #{vae_forward.1} parent=1 // pred_check_branch
      %1691 = sbr.rel (0) target = $region65
    $region64: #{vae_forward.1} parent=1 // pred_region
      _
    $region65: #{vae_forward.1} parent=1 // pred_fallthru
      _
    // Predicated region
    $region66: #{vae_forward.1} parent=1 // pred_check
      _
    $region67: #{vae_forward.1} parent=1 // pred_check_branch
      %1693 = sbr.rel (0) target = $region69
    $region68: #{vae_forward.1} parent=1 // pred_region
      _
    $region69: #{vae_forward.1} parent=1 // pred_fallthru
      _
    %1694 = vsyncpa [#allocation3], 1
    %1695 = vsyncpa [#allocation5], 1

</llo_original>
